<compile_context>
chip_gen: v6e
topology: v6e:2x2x1
jax: 0.10.0
libtpu: 0.0.40
codegen_flags: <defaults>
</compile_context>

<pallas_src>
import jax
import jax.numpy as jnp
from jax.experimental import pallas as pl
from jax.experimental.pallas import tpu as pltpu


def _round_up(x, m):
    return (x + m - 1) // m * m


def encoder_kernel(xb_ref, xh_ref, w1_ref, b1_ref, w2_ref, b2_ref, out_ref):
    TH, Wp2, C = xb_ref.shape            # body block: TH padded rows, full padded width
    W = Wp2 - 2
    K1 = 9 * C
    K1P = w1_ref.shape[0]

    # Assemble the (TH+2, W+2, C) halo'd input window for this tile:
    # TH body rows + first 2 rows of the 8-row halo block.
    halo = xh_ref[...]
    x_tile = jnp.concatenate([xb_ref[...], halo[0:2]], axis=0)

    # Fused im2col (in VMEM/vregs only): rows = (h, w) pixels of the tile,
    # columns = (kh, kw, c) features, zero-padded to K1P (multiple of 128).
    taps = [x_tile[dh:dh + TH, dw:dw + W, :]
            for dh in range(3) for dw in range(3)]
    if K1P > K1:
        taps.append(jnp.zeros((TH, W, K1P - K1), x_tile.dtype))
    patches = jnp.concatenate(taps, axis=-1).reshape(TH * W, K1P)

    # Synthetic backbone: conv3x3 as a single full-width MXU matmul (bf16 in, f32 acc),
    # bias + ReLU in f32 on the VPU.
    h = jnp.dot(patches, w1_ref[...], preferred_element_type=jnp.float32)
    h = jnp.maximum(h + b1_ref[...], 0.0)

    # Encoder head: 1x1 conv == matmul channels -> embed (bf16 in, f32 acc) + bias.
    y = jnp.dot(h.astype(w2_ref.dtype), w2_ref[...],
                preferred_element_type=jnp.float32) + b2_ref[...]
    out_ref[...] = y.astype(out_ref.dtype)


def encoder_forward(x_nchw, params):
    """x_nchw: (B, C_in, H, W) float32 -> (H*W, B, embed_size) float32."""
    w1, b1, w2, b2 = params
    B, C_in, H, W = x_nchw.shape
    channels = w1.shape[0]
    E = w2.shape[0]

    # Padded feature sizes (multiples of 128 -> full-width MXU / lane-dense stores).
    CP = _round_up(channels, 128)
    EP = _round_up(E, 128)
    K1 = 9 * C_in
    K1P = _round_up(K1, 128)

    # Row tiling: TH multiple of 8 dividing H_eff, targeting 512-2048 pixel rows/tile.
    H_eff = _round_up(H, 8)
    TH = 8
    for d in range(8, H_eff + 1, 8):
        if H_eff % d == 0 and d * W <= 2048:
            TH = d
    NT = H_eff // TH

    # ---- glue on the SMALL tensors only (layout conversion, padding, bf16 cast) ----
    # Padded NHWC input: 1 row/col of conv zero-padding; extra bottom rows so the
    # 8-row halo block of the last tile stays in bounds.
    x_nhwc = jnp.transpose(x_nchw, (0, 2, 3, 1)).astype(jnp.bfloat16)
    x_pad = jnp.pad(x_nhwc, ((0, 0), (1, H_eff - H + 7), (1, 1), (0, 0)))

    # Backbone conv weight flattened to (kh, kw, c)-ordered rows, zero-padded.
    w1_mat = jnp.transpose(w1, (2, 3, 1, 0)).reshape(K1, channels)
    w1_p = jnp.zeros((K1P, CP), jnp.bfloat16).at[:K1, :channels].set(
        w1_mat.astype(jnp.bfloat16))
    b1_p = jnp.zeros((1, CP), jnp.float32).at[0, :channels].set(b1)
    w2_p = jnp.zeros((CP, EP), jnp.bfloat16).at[:channels, :E].set(
        w2.T.astype(jnp.bfloat16))
    b2_p = jnp.zeros((1, EP), jnp.float32).at[0, :E].set(b2)

    # ---- fused kernel: in-VMEM im2col -> conv3x3+ReLU -> 1x1 conv -> final layout ----
    out2d = pl.pallas_call(
        encoder_kernel,
        out_shape=jax.ShapeDtypeStruct((H_eff * W, B * EP), jnp.float32),
        grid_spec=pltpu.PrefetchScalarGridSpec(
            num_scalar_prefetch=0,
            grid=(B, NT),
            in_specs=[
                # body: TH padded input rows of batch b
                pl.BlockSpec((None, TH, W + 2, C_in),
                             lambda b, i: (b, i, 0, 0)),
                # halo: next 8 padded input rows (only the first 2 are used)
                pl.BlockSpec((None, 8, W + 2, C_in),
                             lambda b, i: (b, (i + 1) * (TH // 8), 0, 0)),
                # resident weights / biases
                pl.BlockSpec((K1P, CP), lambda b, i: (0, 0)),
                pl.BlockSpec((1, CP), lambda b, i: (0, 0)),
                pl.BlockSpec((CP, EP), lambda b, i: (0, 0)),
                pl.BlockSpec((1, EP), lambda b, i: (0, 0)),
            ],
            # lane-dense 128-wide output slab, already in final (h*W+w, b*EP+e) order
            out_specs=pl.BlockSpec((TH * W, EP), lambda b, i: (i, b)),
        ),
        compiler_params=pltpu.CompilerParams(
            dimension_semantics=("parallel", "parallel")),
    )(x_pad, x_pad, w1_p, b1_p, w2_p, b2_p)

    # Free reshapes only (no transpose): (H*W, B*EP) -> (H*W, B, E)
    enc = out2d[:H * W].reshape(H * W, B, EP)
    if EP != E:
        enc = enc[:, :, :E]
    return enc


def init_params(key, c_in, channels, embed_size):
    k1, k2, k3, k4 = jax.random.split(key, 4)
    # synthetic backbone conv3x3: (channels, c_in, 3, 3)
    w1 = jax.random.normal(k1, (channels, c_in, 3, 3), jnp.float32) * 0.1
    b1 = jax.random.normal(k2, (channels,), jnp.float32) * 0.01
    # encoder 1x1 conv: (embed_size, channels)
    w2 = jax.random.normal(k3, (embed_size, channels), jnp.float32) * 0.1
    b2 = jax.random.normal(k4, (embed_size,), jnp.float32) * 0.01
    return w1, b1, w2, b2


def reference_forward(x_nchw, params):
    """Pure-JAX reference mirroring the kernel's bf16-input / f32-accumulate numerics."""
    w1, b1, w2, b2 = params
    f32 = jnp.float32
    xb = x_nchw.astype(jnp.bfloat16).astype(f32)
    w1b = w1.astype(jnp.bfloat16).astype(f32)
    w2b = w2.astype(jnp.bfloat16).astype(f32)
    h = jax.lax.conv_general_dilated(
        xb, w1b, window_strides=(1, 1), padding="SAME",
        dimension_numbers=("NCHW", "OIHW", "NCHW"),
        precision=jax.lax.Precision.HIGHEST)
    h = jnp.maximum(h + b1[None, :, None, None], 0.0)
    h = h.astype(jnp.bfloat16).astype(f32)   # kernel feeds the 2nd matmul in bf16
    y = jax.lax.conv_general_dilated(
        h, w2b[:, :, None, None], window_strides=(1, 1), padding="VALID",
        dimension_numbers=("NCHW", "OIHW", "NCHW"),
        precision=jax.lax.Precision.HIGHEST)
    y = y + b2[None, :, None, None]
    B, E, H, W = y.shape
    return jnp.transpose(y.reshape(B, E, H * W), (2, 0, 1))


if __name__ == "__main__":
    B, C_IN, H, W = 2, 3, 16, 16
    CHANNELS, EMBED = 128, 128

    key = jax.random.PRNGKey(0)
    kx, kp = jax.random.split(key)
    x = jax.random.normal(kx, (B, C_IN, H, W), jnp.float32)
    params = init_params(kp, C_IN, CHANNELS, EMBED)

    out = jax.block_until_ready(encoder_forward(x, params))
    assert out.shape == (H * W, B, EMBED), out.shape

    ref = jax.block_until_ready(reference_forward(x, params))
    err = float(jnp.max(jnp.abs(out - ref)))
    assert err < 1e-2, err

    print("KERNEL_OK")
</pallas_src>

<mosaic_0001>
module attributes {stable_mosaic.version = 11 : i64} {
  func.func @encoder_kernel(%arg0: i32, %arg1: i32, %arg2: memref<1x16x18x3xbf16, #tpu.memory_space<vmem>>, %arg3: memref<1x8x18x3xbf16, #tpu.memory_space<vmem>>, %arg4: memref<128x128xbf16, #tpu.memory_space<vmem>>, %arg5: memref<1x128xf32, #tpu.memory_space<vmem>>, %arg6: memref<128x128xbf16, #tpu.memory_space<vmem>>, %arg7: memref<1x128xf32, #tpu.memory_space<vmem>>, %arg8: memref<256x128xf32, #tpu.memory_space<vmem>>) attributes {dimension_semantics = [#tpu.dimension_semantics<parallel>, #tpu.dimension_semantics<parallel>], iteration_bounds = array<i64: 2, 1>, scalar_prefetch = 0 : i64, scratch_operands = 0 : i64, tpu.core_type = #tpu.core_type<tc>, window_params = [{transform_indices = @transform_0, window_bounds = array<i64: 1, 16, 18, 3>}, {transform_indices = @transform_1, window_bounds = array<i64: 1, 8, 18, 3>}, {pipeline_mode = #tpu.pipeline_mode<synchronous>, transform_indices = @transform_2, window_bounds = array<i64: 128, 128>}, {pipeline_mode = #tpu.pipeline_mode<synchronous>, transform_indices = @transform_3, window_bounds = array<i64: 1, 128>}, {pipeline_mode = #tpu.pipeline_mode<synchronous>, transform_indices = @transform_4, window_bounds = array<i64: 128, 128>}, {pipeline_mode = #tpu.pipeline_mode<synchronous>, transform_indices = @transform_5, window_bounds = array<i64: 1, 128>}, {transform_indices = @transform_6, window_bounds = array<i64: 256, 128>}]} {
    %c0 = arith.constant 0 : index
    %c0_0 = arith.constant 0 : index
    %c0_1 = arith.constant 0 : index
    %c0_2 = arith.constant 0 : index
    %0 = vector.load %arg3[%c0, %c0_0, %c0_1, %c0_2] : memref<1x8x18x3xbf16, #tpu.memory_space<vmem>>, vector<1x8x18x3xbf16>
    %1 = vector.shape_cast %0 : vector<1x8x18x3xbf16> to vector<8x18x3xbf16>
    %c0_3 = arith.constant 0 : index
    %c0_4 = arith.constant 0 : index
    %c0_5 = arith.constant 0 : index
    %c0_6 = arith.constant 0 : index
    %2 = vector.load %arg2[%c0_3, %c0_4, %c0_5, %c0_6] : memref<1x16x18x3xbf16, #tpu.memory_space<vmem>>, vector<1x16x18x3xbf16>
    %3 = vector.shape_cast %2 : vector<1x16x18x3xbf16> to vector<16x18x3xbf16>
    %4 = vector.extract_strided_slice %1 {offsets = [0, 0, 0], sizes = [2, 18, 3], strides = [1, 1, 1]} : vector<8x18x3xbf16> to vector<2x18x3xbf16>
    %5 = tpu.concatenate %3, %4 in 0 : vector<16x18x3xbf16>, vector<2x18x3xbf16> -> vector<18x18x3xbf16>
    %6 = vector.extract_strided_slice %5 {offsets = [0, 0, 0], sizes = [16, 16, 3], strides = [1, 1, 1]} : vector<18x18x3xbf16> to vector<16x16x3xbf16>
    %7 = vector.extract_strided_slice %5 {offsets = [0, 1, 0], sizes = [16, 16, 3], strides = [1, 1, 1]} : vector<18x18x3xbf16> to vector<16x16x3xbf16>
    %8 = vector.extract_strided_slice %5 {offsets = [0, 2, 0], sizes = [16, 16, 3], strides = [1, 1, 1]} : vector<18x18x3xbf16> to vector<16x16x3xbf16>
    %9 = vector.extract_strided_slice %5 {offsets = [1, 0, 0], sizes = [16, 16, 3], strides = [1, 1, 1]} : vector<18x18x3xbf16> to vector<16x16x3xbf16>
    %10 = vector.extract_strided_slice %5 {offsets = [1, 1, 0], sizes = [16, 16, 3], strides = [1, 1, 1]} : vector<18x18x3xbf16> to vector<16x16x3xbf16>
    %11 = vector.extract_strided_slice %5 {offsets = [1, 2, 0], sizes = [16, 16, 3], strides = [1, 1, 1]} : vector<18x18x3xbf16> to vector<16x16x3xbf16>
    %12 = vector.extract_strided_slice %5 {offsets = [2, 0, 0], sizes = [16, 16, 3], strides = [1, 1, 1]} : vector<18x18x3xbf16> to vector<16x16x3xbf16>
    %13 = vector.extract_strided_slice %5 {offsets = [2, 1, 0], sizes = [16, 16, 3], strides = [1, 1, 1]} : vector<18x18x3xbf16> to vector<16x16x3xbf16>
    %14 = vector.extract_strided_slice %5 {offsets = [2, 2, 0], sizes = [16, 16, 3], strides = [1, 1, 1]} : vector<18x18x3xbf16> to vector<16x16x3xbf16>
    %cst = arith.constant 0.000000e+00 : bf16
    %15 = vector.broadcast %cst : bf16 to vector<16x16x101xbf16>
    %16 = tpu.concatenate %6, %7, %8, %9, %10, %11, %12, %13, %14, %15 in 2 : vector<16x16x3xbf16>, vector<16x16x3xbf16>, vector<16x16x3xbf16>, vector<16x16x3xbf16>, vector<16x16x3xbf16>, vector<16x16x3xbf16>, vector<16x16x3xbf16>, vector<16x16x3xbf16>, vector<16x16x3xbf16>, vector<16x16x101xbf16> -> vector<16x16x128xbf16>
    %17 = vector.shape_cast %16 : vector<16x16x128xbf16> to vector<256x128xbf16>
    %c0_7 = arith.constant 0 : index
    %c0_8 = arith.constant 0 : index
    %18 = vector.load %arg4[%c0_7, %c0_8] : memref<128x128xbf16, #tpu.memory_space<vmem>>, vector<128x128xbf16>
    %cst_9 = arith.constant dense<0.000000e+00> : vector<256x128xf32>
    %19 = tpu.matmul %17, %18, %cst_9 {dimension_numbers = #tpu.dot_dimension_numbers<[1], [0], [0], [1], [0, 0, 1, 1], [], []>} : vector<256x128xbf16>, vector<128x128xbf16>, vector<256x128xf32> -> vector<256x128xf32>
    %c0_10 = arith.constant 0 : index
    %c0_11 = arith.constant 0 : index
    %20 = vector.load %arg5[%c0_10, %c0_11] : memref<1x128xf32, #tpu.memory_space<vmem>>, vector<1x128xf32>
    %21 = vector.broadcast %20 : vector<1x128xf32> to vector<256x128xf32>
    %22 = arith.addf %19, %21 : vector<256x128xf32>
    %cst_12 = arith.constant 0.000000e+00 : f32
    %23 = vector.broadcast %cst_12 : f32 to vector<256x128xf32>
    %24 = arith.maximumf %22, %23 : vector<256x128xf32>
    %25 = arith.truncf %24 : vector<256x128xf32> to vector<256x128xbf16>
    %c0_13 = arith.constant 0 : index
    %c0_14 = arith.constant 0 : index
    %26 = vector.load %arg6[%c0_13, %c0_14] : memref<128x128xbf16, #tpu.memory_space<vmem>>, vector<128x128xbf16>
    %cst_15 = arith.constant dense<0.000000e+00> : vector<256x128xf32>
    %27 = tpu.matmul %25, %26, %cst_15 {dimension_numbers = #tpu.dot_dimension_numbers<[1], [0], [0], [1], [0, 0, 1, 1], [], []>} : vector<256x128xbf16>, vector<128x128xbf16>, vector<256x128xf32> -> vector<256x128xf32>
    %c0_16 = arith.constant 0 : index
    %c0_17 = arith.constant 0 : index
    %28 = vector.load %arg7[%c0_16, %c0_17] : memref<1x128xf32, #tpu.memory_space<vmem>>, vector<1x128xf32>
    %29 = vector.broadcast %28 : vector<1x128xf32> to vector<256x128xf32>
    %30 = arith.addf %27, %29 : vector<256x128xf32>
    %c0_18 = arith.constant 0 : index
    %c0_19 = arith.constant 0 : index
    %31 = vector.load %arg8[%c0_18, %c0_19] : memref<256x128xf32, #tpu.memory_space<vmem>>, vector<256x128xf32>
    tpu.vector_store %arg8[%c0_18, %c0_19], %30 {strides = array<i32>} : memref<256x128xf32, #tpu.memory_space<vmem>>, vector<256x128xf32>,
    return
  }
  func.func @transform_0(%arg0: i32, %arg1: i32) -> (i32, i32, i32, i32) {
    %c0_i32 = arith.constant 0 : i32
    %c0_i32_0 = arith.constant 0 : i32
    %c0_i32_1 = arith.constant 0 : i32
    return %arg0, %arg1, %c0_i32, %c0_i32_0 : i32, i32, i32, i32
  }
  func.func @transform_1(%arg0: i32, %arg1: i32) -> (i32, i32, i32, i32) {
    %c1_i32 = arith.constant 1 : i32
    %0 = arith.addi %arg1, %c1_i32 : i32
    %c2_i32 = arith.constant 2 : i32
    %1 = arith.muli %0, %c2_i32 : i32
    %c0_i32 = arith.constant 0 : i32
    %c0_i32_0 = arith.constant 0 : i32
    %c0_i32_1 = arith.constant 0 : i32
    return %arg0, %1, %c0_i32, %c0_i32_0 : i32, i32, i32, i32
  }
  func.func @transform_2(%arg0: i32, %arg1: i32) -> (i32, i32) {
    %c0_i32 = arith.constant 0 : i32
    %c0_i32_0 = arith.constant 0 : i32
    %c0_i32_1 = arith.constant 0 : i32
    return %c0_i32, %c0_i32_0 : i32, i32
  }
  func.func @transform_3(%arg0: i32, %arg1: i32) -> (i32, i32) {
    %c0_i32 = arith.constant 0 : i32
    %c0_i32_0 = arith.constant 0 : i32
    %c0_i32_1 = arith.constant 0 : i32
    return %c0_i32, %c0_i32_0 : i32, i32
  }
  func.func @transform_4(%arg0: i32, %arg1: i32) -> (i32, i32) {
    %c0_i32 = arith.constant 0 : i32
    %c0_i32_0 = arith.constant 0 : i32
    %c0_i32_1 = arith.constant 0 : i32
    return %c0_i32, %c0_i32_0 : i32, i32
  }
  func.func @transform_5(%arg0: i32, %arg1: i32) -> (i32, i32) {
    %c0_i32 = arith.constant 0 : i32
    %c0_i32_0 = arith.constant 0 : i32
    %c0_i32_1 = arith.constant 0 : i32
    return %c0_i32, %c0_i32_0 : i32, i32
  }
  func.func @transform_6(%arg0: i32, %arg1: i32) -> (i32, i32) {
    %c0_i32 = arith.constant 0 : i32
    return %arg1, %arg0 : i32, i32
  }
}

</mosaic_0001>

<llo_original>
// kernel: tpu_custom_call.1
$region0: #{tpu_custom_call.1}
  #allocation0 [shape = 'u32[]', space=smem, size = 0x4, offset = 0x4, fixed_abs, tag = 'smem constant byte address 0x4 - core index']
  #allocation1 [shape = 'u32[144,128]{1,0:T(1,128)}', space=vmem, size = 0x12000, scoped, tag = 'internal scratch']
  %s0 = inlined_call_operand.vmem [shape: bf16[2,24,18,3], index: 0, kind: input, shape index: {}]
  %s1 = inlined_call_operand.vmem [shape: bf16[2,24,18,3], index: 1, kind: input, shape index: {}]
  %s2 = inlined_call_operand.vmem [shape: bf16[128,128], index: 2, kind: input, shape index: {}]
  %s3 = inlined_call_operand.vmem [shape: f32[1,128], index: 3, kind: input, shape index: {}]
  %s4 = inlined_call_operand.vmem [shape: bf16[128,128], index: 4, kind: input, shape index: {}]
  %s5 = inlined_call_operand.vmem [shape: f32[1,128], index: 5, kind: input, shape index: {}]
  %s6 = inlined_call_operand.hbm [shape: f32[256,256], index: 6, kind: output, shape index: {}]
  %s7 = sld [smem:[#allocation0]]
  $region57: #{tpu_custom_call.1} parent=0
    _
  %s9 = ssub.s32 1, %s7
  %s10 = scalar_select 0, %s9, %s7
  $region1: #{tpu_custom_call.1} parent=0
    #allocation2 [shape = 'u8[262144]{0}', space=vmem, size = 0x40000, scoped, tag = 'output window, operand 0']
    #allocation3 [shape = 's32[2]{0}', space=sflag, size = 0x8, scoped, tag = 'scoped memory for tpu_custom_call.1']
    %11 = vsyncpa [#allocation3], 0
    %s12 = scalar_lea.sflag [#allocation3], 1
    %13 = vsyncpa %s12, 0
    loop: start=0, step=1, limit=4
    $region2: #{tpu_custom_call.1} parent=1 // loop_pre_header
      _
    $region3: #{tpu_custom_call.1} parent=1 // loop_header
      %s15 = sphi 0, %s19
      %p16 = scmp.ge.s32.totalorder %s15, 4
      %s22 = sphi 0, %s34
      %s23 = sphi 0, %s30
      %s24 = sphi 0, %s22
      %s25 = sphi 0, %s23
      %s26 = sphi 0, %s24
      %s27 = sphi 0, %s25
      %s39 = sphi 0, %s41
      %s42 = sphi 0, %s39
      %s43 = sphi 0, %s42
      %s59 = sphi 0, %s43
      %s71 = sphi 0, %s73
      %s74 = sphi 0, %s71
      %s75 = sphi 0, %s74
      %s91 = sphi 0, %s75
      %s95 = sphi 0, %s95
      %s97 = sphi 0, %s95
      %s98 = sphi 0, %s97
      %s112 = sphi 0, %s98
      %s116 = sphi 0, %s116
      %s118 = sphi 0, %s116
      %s119 = sphi 0, %s118
      %s133 = sphi 0, %s119
      %s137 = sphi 0, %s137
      %s139 = sphi 0, %s137
      %s140 = sphi 0, %s139
      %s154 = sphi 0, %s140
      %s158 = sphi 0, %s158
      %s160 = sphi 0, %s158
      %s161 = sphi 0, %s160
      %s175 = sphi 0, %s161
      %s183 = sphi 0, %s185
      %s186 = sphi 0, %s183
      %s187 = sphi 0, %s186
      %s203 = sphi 0, %s187
    $region4: #{tpu_custom_call.1} parent=1 // loop_header_branch
      %18 = sbr.rel (%p16) target = $region8
    $region5: #{tpu_custom_call.1} parent=1 // loop_body
      %s20 = ssub.s32 %s15, 1
      %s21 = ssub.s32 %s15, 2
      %s28 = sadd.s32 1, %s23
      %p29 = scmp.ge.s32.totalorder %s28, 1
      %s30 = scalar_select %p29, 0, %s28
      %s31 = sadd.s32 1, %s22
      %s32 = scalar_select %p29, %s31, %s22
      %p33 = scmp.ge.s32.totalorder %s32, 2
      %s34 = scalar_select %p33, 0, %s32
      %s35 = ssub.s32 %s22, %s34
      %s36 = ssub.s32 %s23, %s30
      %s37 = sor.u32 %s35, %s36
      %p38 = scmp.eq.s32.totalorder %s37, 0
      %s40 = sadd.s32 %s39, 1
      %s41 = scalar_select %p38, %s39, %s40
      %p44 = pneg %p38
      %p45 = scmp.eq.s32.totalorder %s15, 1
      %p46 = por %p44, %p45
      %p47 = scmp.ne.s32.totalorder %s39, %s42
      %p48 = scmp.eq.s32.totalorder %s15, 0
      %p49 = por %p47, %p48
      %p50 = scmp.ne.s32.totalorder %s39, %s42
      %p51 = scmp.eq.s32.totalorder %s20, 1
      %p52 = por %p50, %p51
      %p53 = scmp.ne.s32.totalorder %s42, %s43
      %p54 = scmp.eq.s32.totalorder %s20, 0
      %p55 = por %p53, %p54
      %p56 = scmp.ne.s32.totalorder %s42, %s43
      %p57 = scmp.eq.s32.totalorder %s21, 1
      %p58 = por %p56, %p57
      %p60 = scmp.ne.s32.totalorder %s43, %s59
      %p61 = scmp.eq.s32.totalorder %s21, 0
      %p62 = por %p60, %p61
      %s63 = sadd.s32 %s23, 1
      %s64 = smul.u32 %s63, 2
      %s65 = sadd.s32 %s30, 1
      %s66 = smul.u32 %s65, 2
      %s67 = ssub.s32 %s22, %s34
      %s68 = ssub.s32 %s64, %s66
      %s69 = sor.u32 %s67, %s68
      %p70 = scmp.eq.s32.totalorder %s69, 0
      %s72 = sadd.s32 %s71, 1
      %s73 = scalar_select %p70, %s71, %s72
      %p76 = pneg %p70
      %p77 = scmp.eq.s32.totalorder %s15, 1
      %p78 = por %p76, %p77
      %p79 = scmp.ne.s32.totalorder %s71, %s74
      %p80 = scmp.eq.s32.totalorder %s15, 0
      %p81 = por %p79, %p80
      %p82 = scmp.ne.s32.totalorder %s71, %s74
      %p83 = scmp.eq.s32.totalorder %s20, 1
      %p84 = por %p82, %p83
      %p85 = scmp.ne.s32.totalorder %s74, %s75
      %p86 = scmp.eq.s32.totalorder %s20, 0
      %p87 = por %p85, %p86
      %p88 = scmp.ne.s32.totalorder %s74, %s75
      %p89 = scmp.eq.s32.totalorder %s21, 1
      %p90 = por %p88, %p89
      %p92 = scmp.ne.s32.totalorder %s75, %s91
      %p93 = scmp.eq.s32.totalorder %s21, 0
      %p94 = por %p92, %p93
      %s96 = sadd.s32 %s95, 1
      %p99 = scmp.eq.s32.totalorder %s15, 1
      %p100 = scmp.ne.s32.totalorder %s95, %s97
      %p101 = scmp.eq.s32.totalorder %s15, 0
      %p102 = por %p100, %p101
      %p103 = scmp.ne.s32.totalorder %s95, %s97
      %p104 = scmp.eq.s32.totalorder %s20, 1
      %p105 = por %p103, %p104
      %p106 = scmp.ne.s32.totalorder %s97, %s98
      %p107 = scmp.eq.s32.totalorder %s20, 0
      %p108 = por %p106, %p107
      %p109 = scmp.ne.s32.totalorder %s97, %s98
      %p110 = scmp.eq.s32.totalorder %s21, 1
      %p111 = por %p109, %p110
      %p113 = scmp.ne.s32.totalorder %s98, %s112
      %p114 = scmp.eq.s32.totalorder %s21, 0
      %p115 = por %p113, %p114
      %s117 = sadd.s32 %s116, 1
      %p120 = scmp.eq.s32.totalorder %s15, 1
      %p121 = scmp.ne.s32.totalorder %s116, %s118
      %p122 = scmp.eq.s32.totalorder %s15, 0
      %p123 = por %p121, %p122
      %p124 = scmp.ne.s32.totalorder %s116, %s118
      %p125 = scmp.eq.s32.totalorder %s20, 1
      %p126 = por %p124, %p125
      %p127 = scmp.ne.s32.totalorder %s118, %s119
      %p128 = scmp.eq.s32.totalorder %s20, 0
      %p129 = por %p127, %p128
      %p130 = scmp.ne.s32.totalorder %s118, %s119
      %p131 = scmp.eq.s32.totalorder %s21, 1
      %p132 = por %p130, %p131
      %p134 = scmp.ne.s32.totalorder %s119, %s133
      %p135 = scmp.eq.s32.totalorder %s21, 0
      %p136 = por %p134, %p135
      %s138 = sadd.s32 %s137, 1
      %p141 = scmp.eq.s32.totalorder %s15, 1
      %p142 = scmp.ne.s32.totalorder %s137, %s139
      %p143 = scmp.eq.s32.totalorder %s15, 0
      %p144 = por %p142, %p143
      %p145 = scmp.ne.s32.totalorder %s137, %s139
      %p146 = scmp.eq.s32.totalorder %s20, 1
      %p147 = por %p145, %p146
      %p148 = scmp.ne.s32.totalorder %s139, %s140
      %p149 = scmp.eq.s32.totalorder %s20, 0
      %p150 = por %p148, %p149
      %p151 = scmp.ne.s32.totalorder %s139, %s140
      %p152 = scmp.eq.s32.totalorder %s21, 1
      %p153 = por %p151, %p152
      %p155 = scmp.ne.s32.totalorder %s140, %s154
      %p156 = scmp.eq.s32.totalorder %s21, 0
      %p157 = por %p155, %p156
      %s159 = sadd.s32 %s158, 1
      %p162 = scmp.eq.s32.totalorder %s15, 1
      %p163 = scmp.ne.s32.totalorder %s158, %s160
      %p164 = scmp.eq.s32.totalorder %s15, 0
      %p165 = por %p163, %p164
      %p166 = scmp.ne.s32.totalorder %s158, %s160
      %p167 = scmp.eq.s32.totalorder %s20, 1
      %p168 = por %p166, %p167
      %p169 = scmp.ne.s32.totalorder %s160, %s161
      %p170 = scmp.eq.s32.totalorder %s20, 0
      %p171 = por %p169, %p170
      %p172 = scmp.ne.s32.totalorder %s160, %s161
      %p173 = scmp.eq.s32.totalorder %s21, 1
      %p174 = por %p172, %p173
      %p176 = scmp.ne.s32.totalorder %s161, %s175
      %p177 = scmp.eq.s32.totalorder %s21, 0
      %p178 = por %p176, %p177
      %s179 = ssub.s32 %s23, %s30
      %s180 = ssub.s32 %s22, %s34
      %s181 = sor.u32 %s179, %s180
      %p182 = scmp.eq.s32.totalorder %s181, 0
      %s184 = sadd.s32 %s183, 1
      %s185 = scalar_select %p182, %s183, %s184
      %p188 = pneg %p182
      %p189 = scmp.eq.s32.totalorder %s15, 1
      %p190 = por %p188, %p189
      %p191 = scmp.ne.s32.totalorder %s183, %s186
      %p192 = scmp.eq.s32.totalorder %s15, 0
      %p193 = por %p191, %p192
      %p194 = scmp.ne.s32.totalorder %s183, %s186
      %p195 = scmp.eq.s32.totalorder %s20, 1
      %p196 = por %p194, %p195
      %p197 = scmp.ne.s32.totalorder %s186, %s187
      %p198 = scmp.eq.s32.totalorder %s20, 0
      %p199 = por %p197, %p198
      %p200 = scmp.ne.s32.totalorder %s186, %s187
      %p201 = scmp.eq.s32.totalorder %s21, 1
      %p202 = por %p200, %p201
      %p204 = scmp.ne.s32.totalorder %s187, %s203
      %p205 = scmp.eq.s32.totalorder %s21, 0
      %p206 = por %p204, %p205
      %p207 = scmp.le.s32.totalorder 1, %s15
      %p208 = scmp.lt.s32.totalorder %s15, 3
      %p209 = pnand %p207, %p208
      %p210 = pneg %p209
      // Predicated region
      $region9: #{tpu_custom_call.1} parent=5 // pred_check
        _
      $region10: #{tpu_custom_call.1} parent=5 // pred_check_branch
        %212 = sbr.rel (%p209) target = $region12
      $region11: #{tpu_custom_call.1} parent=5 // pred_region
        %s213 = ssub.s32 %s15, 1
        // Predicated region
        $region13: #{tpu_custom_call.1} parent=11 // pred_check
          %p214 = pneg %p108
        $region14: #{tpu_custom_call.1} parent=11 // pred_check_branch
          %216 = sbr.rel (%p214) target = $region16
        $region15: #{tpu_custom_call.1} parent=11 // pred_region
          _
        $region16: #{tpu_custom_call.1} parent=11 // pred_fallthru
          _
        // Predicated region
        $region17: #{tpu_custom_call.1} parent=11 // pred_check
          %p217 = pneg %p129
        $region18: #{tpu_custom_call.1} parent=11 // pred_check_branch
          %219 = sbr.rel (%p217) target = $region20
        $region19: #{tpu_custom_call.1} parent=11 // pred_region
          _
        $region20: #{tpu_custom_call.1} parent=11 // pred_fallthru
          _
        // Predicated region
        $region21: #{tpu_custom_call.1} parent=11 // pred_check
          %p220 = pneg %p150
        $region22: #{tpu_custom_call.1} parent=11 // pred_check_branch
          %222 = sbr.rel (%p220) target = $region24
        $region23: #{tpu_custom_call.1} parent=11 // pred_region
          _
        $region24: #{tpu_custom_call.1} parent=11 // pred_fallthru
          _
        // Predicated region
        $region25: #{tpu_custom_call.1} parent=11 // pred_check
          %p223 = pneg %p171
        $region26: #{tpu_custom_call.1} parent=11 // pred_check_branch
          %225 = sbr.rel (%p223) target = $region28
        $region27: #{tpu_custom_call.1} parent=11 // pred_region
          _
        $region28: #{tpu_custom_call.1} parent=11 // pred_fallthru
          _
      $region12: #{tpu_custom_call.1} parent=5 // pred_fallthru
        _
      %p226 = scmp.lt.s32.totalorder %s15, 2
      // Predicated region
      $region29: #{tpu_custom_call.1} parent=5 // pred_check
        %p227 = pneg %p226
      $region30: #{tpu_custom_call.1} parent=5 // pred_check_branch
        %229 = sbr.rel (%p227) target = $region32
      $region31: #{tpu_custom_call.1} parent=5 // pred_region
        // Predicated region
        $region33: #{tpu_custom_call.1} parent=31 // pred_check
          %p230 = pneg %p49
        $region34: #{tpu_custom_call.1} parent=31 // pred_check_branch
          %232 = sbr.rel (%p230) target = $region36
        $region35: #{tpu_custom_call.1} parent=31 // pred_region
          %s233 = smul.u32 16, %s23
          %s234 = ssub.s32 24, %s233
          %p235 = scmp.lt.s32.totalorder %s234, 16
          %s236 = scalar_select %p235, %s234, 16
          %s237 = smul.u32 64, %s236
          %s238 = smul.u32 %s237, 3
          %p239 = scmp.lt.s32.totalorder %s22, 1
          %s240 = scalar_select %p239, %s22, 1
          %p241 = scmp.lt.s32.totalorder %s233, 23
          %s242 = scalar_select %p241, %s233, 23
          %s243 = smul.addr %s242, 3
          %s244 = smul.addr %s240, 72
          %s245 = sadd.s32 %s243, %s244
          %s246 = smul.addr %s245, 4
          %s247 = scalar_lea.vmem %s0, %s246
          %s248 = smul.u32 16, %s23
          %s249 = ssub.s32 24, %s248
          %p250 = scmp.lt.s32.totalorder %s249, 16
          %s251 = scalar_select %p250, %s249, 16
          %s252 = smul.u32 64, %s251
          %s253 = smul.u32 %s252, 3
        $region36: #{tpu_custom_call.1} parent=31 // pred_fallthru
          _
        // Predicated region
        $region37: #{tpu_custom_call.1} parent=31 // pred_check
          %p254 = pneg %p81
        $region38: #{tpu_custom_call.1} parent=31 // pred_check_branch
          %256 = sbr.rel (%p254) target = $region40
        $region39: #{tpu_custom_call.1} parent=31 // pred_region
          %s257 = sadd.s32 %s23, 1
          %s258 = smul.u32 %s257, 2
          %s259 = smul.u32 8, %s258
          %p260 = scmp.lt.s32.totalorder %s22, 1
          %s261 = scalar_select %p260, %s22, 1
          %p262 = scmp.lt.s32.totalorder %s259, 23
          %s263 = scalar_select %p262, %s259, 23
          %s264 = smul.addr %s263, 3
          %s265 = smul.addr %s261, 72
          %s266 = sadd.s32 %s264, %s265
          %s267 = smul.addr %s266, 4
          %s268 = scalar_lea.vmem %s1, %s267
          %s269 = sadd.s32 %s23, 1
          %s270 = smul.u32 %s269, 2
          %s271 = smul.u32 8, %s270
        $region40: #{tpu_custom_call.1} parent=31 // pred_fallthru
          _
      $region32: #{tpu_custom_call.1} parent=5 // pred_fallthru
        _
      %p272 = scmp.le.s32.totalorder 1, %s15
      %p273 = scmp.lt.s32.totalorder %s15, 3
      %p274 = pnand %p272, %p273
      %p275 = pneg %p274
      // Predicated region
      $region41: #{tpu_custom_call.1} parent=5 // pred_check
        _
      $region42: #{tpu_custom_call.1} parent=5 // pred_check_branch
        %277 = sbr.rel (%p274) target = $region44
      $region43: #{tpu_custom_call.1} parent=5 // pred_region
        %s278 = ssub.s32 %s15, 1
        %s279 = smul.u32 16, %s25
        %s280 = ssub.s32 24, %s279
        %p281 = scmp.lt.s32.totalorder %s280, 16
        %s282 = scalar_select %p281, %s280, 16
        %s283 = smul.u32 64, %s282
        %s284 = smul.u32 %s283, 3
        %p285 = scmp.lt.s32.totalorder %s24, 1
        %s286 = scalar_select %p285, %s24, 1
        %p287 = scmp.lt.s32.totalorder %s279, 23
        %s288 = scalar_select %p287, %s279, 23
        %s289 = smul.addr %s288, 3
        %s290 = smul.addr %s286, 72
        %s291 = sadd.s32 %s289, %s290
        %s292 = smul.addr %s291, 4
        %s293 = scalar_lea.vmem %s0, %s292
        %p294 = pneg %p55
        %p295 = pneg %p52
        %s296 = sadd.s32 %s25, 1
        %s297 = smul.u32 %s296, 2
        %s298 = smul.u32 8, %s297
        %p299 = scmp.lt.s32.totalorder %s24, 1
        %s300 = scalar_select %p299, %s24, 1
        %p301 = scmp.lt.s32.totalorder %s298, 23
        %s302 = scalar_select %p301, %s298, 23
        %s303 = smul.addr %s302, 3
        %s304 = smul.addr %s300, 72
        %s305 = sadd.s32 %s303, %s304
        %s306 = smul.addr %s305, 4
        %s307 = scalar_lea.vmem %s1, %s306
        %p308 = pneg %p87
        %p309 = pneg %p84
        %p310 = pneg %p108
        %p311 = pneg %p105
        %p312 = pneg %p129
        %p313 = pneg %p126
        %p314 = pneg %p150
        %p315 = pneg %p147
        %p316 = pneg %p171
        %p317 = pneg %p168
        %p318 = pneg %p199
        %p319 = pneg %p196
        %s320 = sand.u32 %s186, 1
        %s321 = scalar_lea.sflag [#allocation3], %s320
        %s322 = sand.u32 %s186, 1
        %s323 = smul.addr %s322, 256
        %s324 = scalar_lea.vmem [#allocation2], %s323
        %s325 = smul.u32 16, %s25
        %s326 = ssub.s32 24, %s325
        %p327 = scmp.lt.s32.totalorder %s326, 16
        %s328 = scalar_select %p327, %s326, 16
        %s329 = smul.u32 64, %s328
        %s330 = smul.u32 %s329, 3
        %p331 = scmp.lt.s32.totalorder %s24, 1
        %s332 = scalar_select %p331, %s24, 1
        %p333 = scmp.lt.s32.totalorder %s325, 23
        %s334 = scalar_select %p333, %s325, 23
        %s335 = smul.addr %s334, 3
        %s336 = smul.addr %s332, 72
        %s337 = sadd.s32 %s335, %s336
        %s338 = smul.addr %s337, 4
        %s339 = scalar_lea.vmem %s0, %s338
        %s340 = smul.u32 16, %s25
        %s341 = ssub.s32 24, %s340
        %p342 = scmp.lt.s32.totalorder %s341, 16
        %s343 = scalar_select %p342, %s341, 16
        %s344 = smul.u32 64, %s343
        %s345 = smul.u32 %s344, 3
        %s346 = sadd.s32 %s25, 1
        %s347 = smul.u32 %s346, 2
        %s348 = smul.u32 8, %s347
        %p349 = scmp.lt.s32.totalorder %s24, 1
        %s350 = scalar_select %p349, %s24, 1
        %p351 = scmp.lt.s32.totalorder %s348, 23
        %s352 = scalar_select %p351, %s348, 23
        %s353 = smul.addr %s352, 3
        %s354 = smul.addr %s350, 72
        %s355 = sadd.s32 %s353, %s354
        %s356 = smul.addr %s355, 4
        %s357 = scalar_lea.vmem %s1, %s356
        %s358 = sadd.s32 %s25, 1
        %s359 = smul.u32 %s358, 2
        %s360 = smul.u32 8, %s359
        %s361 = smul.u32 32, %s25
        %v363 = vld [vmem:[%s357] sm:$0xf]
        %v364 = vld [vmem:[%s357 + $0x4] sm:$0xf]
        %v365 = vld [vmem:[%s357 + $0x8] sm:$0x1]
        %v366 = vld [vmem:[%s357 + $0xc] sm:$0xf]
        %v367 = vld [vmem:[%s357 + $0x10] sm:$0xf]
        %v368 = vld [vmem:[%s357 + $0x14] sm:$0x1]
        %v369 = vld [vmem:[%s339] sm:$0xf]
        %v370 = vld [vmem:[%s339 + $0x4] sm:$0xf]
        %v371 = vld [vmem:[%s339 + $0x8] sm:$0x1]
        %v372 = vld [vmem:[%s339 + $0xc] sm:$0xf]
        %v373 = vld [vmem:[%s339 + $0x10] sm:$0xf]
        %v374 = vld [vmem:[%s339 + $0x14] sm:$0x1]
        %v375 = vld [vmem:[%s339 + $0x18] sm:$0xf]
        %v376 = vld [vmem:[%s339 + $0x1c] sm:$0xf]
        %v377 = vld [vmem:[%s339 + $0x20] sm:$0x1]
        %v378 = vld [vmem:[%s339 + $0x24] sm:$0xf]
        %v379 = vld [vmem:[%s339 + $0x28] sm:$0xf]
        %v380 = vld [vmem:[%s339 + $0x2c] sm:$0x1]
        %v381 = vld [vmem:[%s339 + $0x30] sm:$0xf]
        %v382 = vld [vmem:[%s339 + $0x34] sm:$0xf]
        %v383 = vld [vmem:[%s339 + $0x38] sm:$0x1]
        %v384 = vld [vmem:[%s339 + $0x3c] sm:$0xf]
        %v385 = vld [vmem:[%s339 + $0x40] sm:$0xf]
        %v386 = vld [vmem:[%s339 + $0x44] sm:$0x1]
        %v387 = vld [vmem:[%s339 + $0x48] sm:$0xf]
        %v388 = vld [vmem:[%s339 + $0x4c] sm:$0xf]
        %v389 = vld [vmem:[%s339 + $0x50] sm:$0x1]
        %v390 = vld [vmem:[%s339 + $0x54] sm:$0xf]
        %v391 = vld [vmem:[%s339 + $0x58] sm:$0xf]
        %v392 = vld [vmem:[%s339 + $0x5c] sm:$0x1]
        %v393 = vld [vmem:[%s339 + $0x60] sm:$0xf]
        %v394 = vld [vmem:[%s339 + $0x64] sm:$0xf]
        %v395 = vld [vmem:[%s339 + $0x68] sm:$0x1]
        %v396 = vld [vmem:[%s339 + $0x6c] sm:$0xf]
        %v397 = vld [vmem:[%s339 + $0x70] sm:$0xf]
        %v398 = vld [vmem:[%s339 + $0x74] sm:$0x1]
        %v399 = vld [vmem:[%s339 + $0x78] sm:$0xf]
        %v400 = vld [vmem:[%s339 + $0x7c] sm:$0xf]
        %v401 = vld [vmem:[%s339 + $0x80] sm:$0x1]
        %v402 = vld [vmem:[%s339 + $0x84] sm:$0xf]
        %v403 = vld [vmem:[%s339 + $0x88] sm:$0xf]
        %v404 = vld [vmem:[%s339 + $0x8c] sm:$0x1]
        %v405 = vld [vmem:[%s339 + $0x90] sm:$0xf]
        %v406 = vld [vmem:[%s339 + $0x94] sm:$0xf]
        %v407 = vld [vmem:[%s339 + $0x98] sm:$0x1]
        %v408 = vld [vmem:[%s339 + $0x9c] sm:$0xf]
        %v409 = vld [vmem:[%s339 + $0xa0] sm:$0xf]
        %v410 = vld [vmem:[%s339 + $0xa4] sm:$0x1]
        %v411 = vld [vmem:[%s339 + $0xa8] sm:$0xf]
        %v412 = vld [vmem:[%s339 + $0xac] sm:$0xf]
        %v413 = vld [vmem:[%s339 + $0xb0] sm:$0x1]
        %v414 = vld [vmem:[%s339 + $0xb4] sm:$0xf]
        %v415 = vld [vmem:[%s339 + $0xb8] sm:$0xf]
        %v416 = vld [vmem:[%s339 + $0xbc] sm:$0x1]
        %v449 = vunpack.c.l.b16 %v369
        %v450 = vunpack.c.l.b16 %v370
        %v451 = vunpack.c.l.b16 %v372
        %v452 = vunpack.c.l.b16 %v373
        %v453 = vunpack.c.l.b16 %v375
        %v454 = vunpack.c.l.b16 %v376
        %v455 = vunpack.c.l.b16 %v378
        %v456 = vunpack.c.l.b16 %v379
        %v457 = vunpack.c.l.b16 %v381
        %v458 = vunpack.c.l.b16 %v382
        %v459 = vunpack.c.l.b16 %v384
        %v460 = vunpack.c.l.b16 %v385
        %v461 = vunpack.c.l.b16 %v387
        %v462 = vunpack.c.l.b16 %v388
        %v463 = vunpack.c.l.b16 %v390
        %v464 = vunpack.c.l.b16 %v391
        %v465 = vunpack.c.l.b16 %v393
        %v466 = vunpack.c.l.b16 %v394
        %v467 = vunpack.c.l.b16 %v396
        %v468 = vunpack.c.l.b16 %v397
        %v469 = vunpack.c.l.b16 %v399
        %v470 = vunpack.c.l.b16 %v400
        %v471 = vunpack.c.l.b16 %v402
        %v472 = vunpack.c.l.b16 %v403
        %v473 = vunpack.c.l.b16 %v405
        %v474 = vunpack.c.l.b16 %v406
        %v475 = vunpack.c.l.b16 %v408
        %v476 = vunpack.c.l.b16 %v409
        %v477 = vunpack.c.l.b16 %v411
        %v478 = vunpack.c.l.b16 %v412
        %v479 = vunpack.c.l.b16 %v414
        %v480 = vunpack.c.l.b16 %v415
        %v481 = vpack.c.b16 %v450, %v449
        %v482 = vpack.c.b16 %v452, %v451
        %v483 = vpack.c.b16 %v454, %v453
        %v484 = vpack.c.b16 %v456, %v455
        %v485 = vpack.c.b16 %v458, %v457
        %v486 = vpack.c.b16 %v460, %v459
        %v487 = vpack.c.b16 %v462, %v461
        %v488 = vpack.c.b16 %v464, %v463
        %v489 = vpack.c.b16 %v466, %v465
        %v490 = vpack.c.b16 %v468, %v467
        %v491 = vpack.c.b16 %v470, %v469
        %v492 = vpack.c.b16 %v472, %v471
        %v493 = vpack.c.b16 %v474, %v473
        %v494 = vpack.c.b16 %v476, %v475
        %v495 = vpack.c.b16 %v478, %v477
        %v496 = vpack.c.b16 %v480, %v479
        %v513 = vunpack.c.l.b16 %v371
        %v514 = vunpack.c.l.b16 %v374
        %v515 = vunpack.c.l.b16 %v377
        %v516 = vunpack.c.l.b16 %v380
        %v517 = vunpack.c.l.b16 %v383
        %v518 = vunpack.c.l.b16 %v386
        %v519 = vunpack.c.l.b16 %v389
        %v520 = vunpack.c.l.b16 %v392
        %v521 = vunpack.c.l.b16 %v395
        %v522 = vunpack.c.l.b16 %v398
        %v523 = vunpack.c.l.b16 %v401
        %v524 = vunpack.c.l.b16 %v404
        %v525 = vunpack.c.l.b16 %v407
        %v526 = vunpack.c.l.b16 %v410
        %v527 = vunpack.c.l.b16 %v413
        %v528 = vunpack.c.l.b16 %v416
        %v529 = vpack.c.b16 %v513, %v513
        %v530 = vpack.c.b16 %v514, %v514
        %v531 = vpack.c.b16 %v515, %v515
        %v532 = vpack.c.b16 %v516, %v516
        %v533 = vpack.c.b16 %v517, %v517
        %v534 = vpack.c.b16 %v518, %v518
        %v535 = vpack.c.b16 %v519, %v519
        %v536 = vpack.c.b16 %v520, %v520
        %v537 = vpack.c.b16 %v521, %v521
        %v538 = vpack.c.b16 %v522, %v522
        %v539 = vpack.c.b16 %v523, %v523
        %v540 = vpack.c.b16 %v524, %v524
        %v541 = vpack.c.b16 %v525, %v525
        %v542 = vpack.c.b16 %v526, %v526
        %v543 = vpack.c.b16 %v527, %v527
        %v544 = vpack.c.b16 %v528, %v528
        %vm545 = vsmask.f32 7424
        %v547 = vshrl.u32 %v481, 16
        %v549 = vshll.u32 %v481, 16
        %v551 = vrot.slane %v549, 1
        %v552 = vor.u32 %v547, %v551
        %v554 = vshll.u32 %v529, 16
        %v556 = vrot.slane %v554, 1
        %v557 = vsel %vm545, %v552, %v556
        %v559 = vshrl.u32 %v482, 16
        %v561 = vshll.u32 %v482, 16
        %v563 = vrot.slane %v561, 1
        %v564 = vor.u32 %v559, %v563
        %v566 = vshll.u32 %v530, 16
        %v568 = vrot.slane %v566, 1
        %v569 = vsel %vm545, %v564, %v568
        %v571 = vshrl.u32 %v483, 16
        %v573 = vshll.u32 %v483, 16
        %v575 = vrot.slane %v573, 1
        %v576 = vor.u32 %v571, %v575
        %v578 = vshll.u32 %v531, 16
        %v580 = vrot.slane %v578, 1
        %v581 = vsel %vm545, %v576, %v580
        %v583 = vshrl.u32 %v484, 16
        %v585 = vshll.u32 %v484, 16
        %v587 = vrot.slane %v585, 1
        %v588 = vor.u32 %v583, %v587
        %v590 = vshll.u32 %v532, 16
        %v592 = vrot.slane %v590, 1
        %v593 = vsel %vm545, %v588, %v592
        %v595 = vshrl.u32 %v485, 16
        %v597 = vshll.u32 %v485, 16
        %v599 = vrot.slane %v597, 1
        %v600 = vor.u32 %v595, %v599
        %v602 = vshll.u32 %v533, 16
        %v604 = vrot.slane %v602, 1
        %v605 = vsel %vm545, %v600, %v604
        %v607 = vshrl.u32 %v486, 16
        %v609 = vshll.u32 %v486, 16
        %v611 = vrot.slane %v609, 1
        %v612 = vor.u32 %v607, %v611
        %v614 = vshll.u32 %v534, 16
        %v616 = vrot.slane %v614, 1
        %v617 = vsel %vm545, %v612, %v616
        %v619 = vshrl.u32 %v487, 16
        %v621 = vshll.u32 %v487, 16
        %v623 = vrot.slane %v621, 1
        %v624 = vor.u32 %v619, %v623
        %v626 = vshll.u32 %v535, 16
        %v628 = vrot.slane %v626, 1
        %v629 = vsel %vm545, %v624, %v628
        %v631 = vshrl.u32 %v488, 16
        %v633 = vshll.u32 %v488, 16
        %v635 = vrot.slane %v633, 1
        %v636 = vor.u32 %v631, %v635
        %v638 = vshll.u32 %v536, 16
        %v640 = vrot.slane %v638, 1
        %v641 = vsel %vm545, %v636, %v640
        %v643 = vshrl.u32 %v489, 16
        %v645 = vshll.u32 %v489, 16
        %v647 = vrot.slane %v645, 1
        %v648 = vor.u32 %v643, %v647
        %v650 = vshll.u32 %v537, 16
        %v652 = vrot.slane %v650, 1
        %v653 = vsel %vm545, %v648, %v652
        %v655 = vshrl.u32 %v490, 16
        %v657 = vshll.u32 %v490, 16
        %v659 = vrot.slane %v657, 1
        %v660 = vor.u32 %v655, %v659
        %v662 = vshll.u32 %v538, 16
        %v664 = vrot.slane %v662, 1
        %v665 = vsel %vm545, %v660, %v664
        %v667 = vshrl.u32 %v491, 16
        %v669 = vshll.u32 %v491, 16
        %v671 = vrot.slane %v669, 1
        %v672 = vor.u32 %v667, %v671
        %v674 = vshll.u32 %v539, 16
        %v676 = vrot.slane %v674, 1
        %v677 = vsel %vm545, %v672, %v676
        %v679 = vshrl.u32 %v492, 16
        %v681 = vshll.u32 %v492, 16
        %v683 = vrot.slane %v681, 1
        %v684 = vor.u32 %v679, %v683
        %v686 = vshll.u32 %v540, 16
        %v688 = vrot.slane %v686, 1
        %v689 = vsel %vm545, %v684, %v688
        %v691 = vshrl.u32 %v493, 16
        %v693 = vshll.u32 %v493, 16
        %v695 = vrot.slane %v693, 1
        %v696 = vor.u32 %v691, %v695
        %v698 = vshll.u32 %v541, 16
        %v700 = vrot.slane %v698, 1
        %v701 = vsel %vm545, %v696, %v700
        %v703 = vshrl.u32 %v494, 16
        %v705 = vshll.u32 %v494, 16
        %v707 = vrot.slane %v705, 1
        %v708 = vor.u32 %v703, %v707
        %v710 = vshll.u32 %v542, 16
        %v712 = vrot.slane %v710, 1
        %v713 = vsel %vm545, %v708, %v712
        %v715 = vshrl.u32 %v495, 16
        %v717 = vshll.u32 %v495, 16
        %v719 = vrot.slane %v717, 1
        %v720 = vor.u32 %v715, %v719
        %v722 = vshll.u32 %v543, 16
        %v724 = vrot.slane %v722, 1
        %v725 = vsel %vm545, %v720, %v724
        %v727 = vshrl.u32 %v496, 16
        %v729 = vshll.u32 %v496, 16
        %v731 = vrot.slane %v729, 1
        %v732 = vor.u32 %v727, %v731
        %v734 = vshll.u32 %v544, 16
        %v736 = vrot.slane %v734, 1
        %v737 = vsel %vm545, %v732, %v736
        %738 = vrot.lane.b32.xlu0 %v557, 3
        %v739 = vpop.permute.xlu0 %738
        %740 = vrot.lane.b32.xlu0 %v569, 3
        %v741 = vpop.permute.xlu0 %740
        %742 = vrot.lane.b32.xlu0 %v581, 3
        %v743 = vpop.permute.xlu0 %742
        %744 = vrot.lane.b32.xlu0 %v593, 3
        %v745 = vpop.permute.xlu0 %744
        %746 = vrot.lane.b32.xlu0 %v605, 3
        %v747 = vpop.permute.xlu0 %746
        %748 = vrot.lane.b32.xlu0 %v617, 3
        %v749 = vpop.permute.xlu0 %748
        %750 = vrot.lane.b32.xlu0 %v629, 3
        %v751 = vpop.permute.xlu0 %750
        %752 = vrot.lane.b32.xlu0 %v641, 3
        %v753 = vpop.permute.xlu0 %752
        %754 = vrot.lane.b32.xlu0 %v653, 3
        %v755 = vpop.permute.xlu0 %754
        %756 = vrot.lane.b32.xlu0 %v665, 3
        %v757 = vpop.permute.xlu0 %756
        %758 = vrot.lane.b32.xlu0 %v677, 3
        %v759 = vpop.permute.xlu0 %758
        %760 = vrot.lane.b32.xlu0 %v689, 3
        %v761 = vpop.permute.xlu0 %760
        %762 = vrot.lane.b32.xlu0 %v701, 3
        %v763 = vpop.permute.xlu0 %762
        %764 = vrot.lane.b32.xlu0 %v713, 3
        %v765 = vpop.permute.xlu0 %764
        %766 = vrot.lane.b32.xlu0 %v725, 3
        %v767 = vpop.permute.xlu0 %766
        %768 = vrot.lane.b32.xlu0 %v737, 3
        %v769 = vpop.permute.xlu0 %768
        %vm770 = vcmask 1046528
        %v771 = vrot.slane %v481, 1
        %v772 = vrot.slane %v529, 1
        %v773 = vsel %vm770, %v771, %v772
        %v774 = vrot.slane %v482, 1
        %v775 = vrot.slane %v530, 1
        %v776 = vsel %vm770, %v774, %v775
        %v777 = vrot.slane %v483, 1
        %v778 = vrot.slane %v531, 1
        %v779 = vsel %vm770, %v777, %v778
        %v780 = vrot.slane %v484, 1
        %v781 = vrot.slane %v532, 1
        %v782 = vsel %vm770, %v780, %v781
        %v783 = vrot.slane %v485, 1
        %v784 = vrot.slane %v533, 1
        %v785 = vsel %vm770, %v783, %v784
        %v786 = vrot.slane %v486, 1
        %v787 = vrot.slane %v534, 1
        %v788 = vsel %vm770, %v786, %v787
        %v789 = vrot.slane %v487, 1
        %v790 = vrot.slane %v535, 1
        %v791 = vsel %vm770, %v789, %v790
        %v792 = vrot.slane %v488, 1
        %v793 = vrot.slane %v536, 1
        %v794 = vsel %vm770, %v792, %v793
        %v795 = vrot.slane %v489, 1
        %v796 = vrot.slane %v537, 1
        %v797 = vsel %vm770, %v795, %v796
        %v798 = vrot.slane %v490, 1
        %v799 = vrot.slane %v538, 1
        %v800 = vsel %vm770, %v798, %v799
        %v801 = vrot.slane %v491, 1
        %v802 = vrot.slane %v539, 1
        %v803 = vsel %vm770, %v801, %v802
        %v804 = vrot.slane %v492, 1
        %v805 = vrot.slane %v540, 1
        %v806 = vsel %vm770, %v804, %v805
        %v807 = vrot.slane %v493, 1
        %v808 = vrot.slane %v541, 1
        %v809 = vsel %vm770, %v807, %v808
        %v810 = vrot.slane %v494, 1
        %v811 = vrot.slane %v542, 1
        %v812 = vsel %vm770, %v810, %v811
        %v813 = vrot.slane %v495, 1
        %v814 = vrot.slane %v543, 1
        %v815 = vsel %vm770, %v813, %v814
        %v816 = vrot.slane %v496, 1
        %v817 = vrot.slane %v544, 1
        %v818 = vsel %vm770, %v816, %v817
        %819 = vrot.lane.b32.xlu0 %v773, 6
        %v820 = vpop.permute.xlu0 %819
        %821 = vrot.lane.b32.xlu0 %v776, 6
        %v822 = vpop.permute.xlu0 %821
        %823 = vrot.lane.b32.xlu0 %v779, 6
        %v824 = vpop.permute.xlu0 %823
        %825 = vrot.lane.b32.xlu0 %v782, 6
        %v826 = vpop.permute.xlu0 %825
        %827 = vrot.lane.b32.xlu0 %v785, 6
        %v828 = vpop.permute.xlu0 %827
        %829 = vrot.lane.b32.xlu0 %v788, 6
        %v830 = vpop.permute.xlu0 %829
        %831 = vrot.lane.b32.xlu0 %v791, 6
        %v832 = vpop.permute.xlu0 %831
        %833 = vrot.lane.b32.xlu0 %v794, 6
        %v834 = vpop.permute.xlu0 %833
        %835 = vrot.lane.b32.xlu0 %v797, 6
        %v836 = vpop.permute.xlu0 %835
        %837 = vrot.lane.b32.xlu0 %v800, 6
        %v838 = vpop.permute.xlu0 %837
        %839 = vrot.lane.b32.xlu0 %v803, 6
        %v840 = vpop.permute.xlu0 %839
        %841 = vrot.lane.b32.xlu0 %v806, 6
        %v842 = vpop.permute.xlu0 %841
        %843 = vrot.lane.b32.xlu0 %v809, 6
        %v844 = vpop.permute.xlu0 %843
        %845 = vrot.lane.b32.xlu0 %v812, 6
        %v846 = vpop.permute.xlu0 %845
        %847 = vrot.lane.b32.xlu0 %v815, 6
        %v848 = vpop.permute.xlu0 %847
        %849 = vrot.lane.b32.xlu0 %v818, 6
        %v850 = vpop.permute.xlu0 %849
        %v853 = vunpack.c.l.b16 %v363
        %v854 = vunpack.c.l.b16 %v364
        %v855 = vpack.c.b16 %v854, %v853
        %856 = vrot.lane.b32.xlu0 %v482, 9
        %v857 = vpop.permute.xlu0 %856
        %858 = vrot.lane.b32.xlu0 %v483, 9
        %v859 = vpop.permute.xlu0 %858
        %860 = vrot.lane.b32.xlu0 %v484, 9
        %v861 = vpop.permute.xlu0 %860
        %862 = vrot.lane.b32.xlu0 %v485, 9
        %v863 = vpop.permute.xlu0 %862
        %864 = vrot.lane.b32.xlu0 %v486, 9
        %v865 = vpop.permute.xlu0 %864
        %866 = vrot.lane.b32.xlu0 %v487, 9
        %v867 = vpop.permute.xlu0 %866
        %868 = vrot.lane.b32.xlu0 %v488, 9
        %v869 = vpop.permute.xlu0 %868
        %870 = vrot.lane.b32.xlu0 %v489, 9
        %v871 = vpop.permute.xlu0 %870
        %872 = vrot.lane.b32.xlu0 %v490, 9
        %v873 = vpop.permute.xlu0 %872
        %874 = vrot.lane.b32.xlu0 %v491, 9
        %v875 = vpop.permute.xlu0 %874
        %876 = vrot.lane.b32.xlu0 %v492, 9
        %v877 = vpop.permute.xlu0 %876
        %878 = vrot.lane.b32.xlu0 %v493, 9
        %v879 = vpop.permute.xlu0 %878
        %880 = vrot.lane.b32.xlu0 %v494, 9
        %v881 = vpop.permute.xlu0 %880
        %882 = vrot.lane.b32.xlu0 %v495, 9
        %v883 = vpop.permute.xlu0 %882
        %884 = vrot.lane.b32.xlu0 %v496, 9
        %v885 = vpop.permute.xlu0 %884
        %886 = vrot.lane.b32.xlu0 %v855, 9
        %v887 = vpop.permute.xlu0 %886
        %v889 = vunpack.c.l.b16 %v365
        %v890 = vpack.c.b16 %v889, %v889
        %v892 = vshrl.u32 %v855, 16
        %v894 = vshll.u32 %v855, 16
        %v896 = vrot.slane %v894, 1
        %v897 = vor.u32 %v892, %v896
        %v899 = vshll.u32 %v890, 16
        %v901 = vrot.slane %v899, 1
        %v902 = vsel %vm545, %v897, %v901
        %903 = vrot.lane.b32.xlu0 %v569, 12
        %v904 = vpop.permute.xlu0 %903
        %905 = vrot.lane.b32.xlu0 %v581, 12
        %v906 = vpop.permute.xlu0 %905
        %907 = vrot.lane.b32.xlu0 %v593, 12
        %v908 = vpop.permute.xlu0 %907
        %909 = vrot.lane.b32.xlu0 %v605, 12
        %v910 = vpop.permute.xlu0 %909
        %911 = vrot.lane.b32.xlu0 %v617, 12
        %v912 = vpop.permute.xlu0 %911
        %913 = vrot.lane.b32.xlu0 %v629, 12
        %v914 = vpop.permute.xlu0 %913
        %915 = vrot.lane.b32.xlu0 %v641, 12
        %v916 = vpop.permute.xlu0 %915
        %917 = vrot.lane.b32.xlu0 %v653, 12
        %v918 = vpop.permute.xlu0 %917
        %919 = vrot.lane.b32.xlu0 %v665, 12
        %v920 = vpop.permute.xlu0 %919
        %921 = vrot.lane.b32.xlu0 %v677, 12
        %v922 = vpop.permute.xlu0 %921
        %923 = vrot.lane.b32.xlu0 %v689, 12
        %v924 = vpop.permute.xlu0 %923
        %925 = vrot.lane.b32.xlu0 %v701, 12
        %v926 = vpop.permute.xlu0 %925
        %927 = vrot.lane.b32.xlu0 %v713, 12
        %v928 = vpop.permute.xlu0 %927
        %929 = vrot.lane.b32.xlu0 %v725, 12
        %v930 = vpop.permute.xlu0 %929
        %931 = vrot.lane.b32.xlu0 %v737, 12
        %v932 = vpop.permute.xlu0 %931
        %933 = vrot.lane.b32.xlu0 %v902, 12
        %v934 = vpop.permute.xlu0 %933
        %v935 = vrot.slane %v855, 1
        %v936 = vrot.slane %v890, 1
        %v937 = vsel %vm770, %v935, %v936
        %938 = vrot.lane.b32.xlu0 %v776, 15
        %v939 = vpop.permute.xlu0 %938
        %940 = vrot.lane.b32.xlu0 %v779, 15
        %v941 = vpop.permute.xlu0 %940
        %942 = vrot.lane.b32.xlu0 %v782, 15
        %v943 = vpop.permute.xlu0 %942
        %944 = vrot.lane.b32.xlu0 %v785, 15
        %v945 = vpop.permute.xlu0 %944
        %946 = vrot.lane.b32.xlu0 %v788, 15
        %v947 = vpop.permute.xlu0 %946
        %948 = vrot.lane.b32.xlu0 %v791, 15
        %v949 = vpop.permute.xlu0 %948
        %950 = vrot.lane.b32.xlu0 %v794, 15
        %v951 = vpop.permute.xlu0 %950
        %952 = vrot.lane.b32.xlu0 %v797, 15
        %v953 = vpop.permute.xlu0 %952
        %954 = vrot.lane.b32.xlu0 %v800, 15
        %v955 = vpop.permute.xlu0 %954
        %956 = vrot.lane.b32.xlu0 %v803, 15
        %v957 = vpop.permute.xlu0 %956
        %958 = vrot.lane.b32.xlu0 %v806, 15
        %v959 = vpop.permute.xlu0 %958
        %960 = vrot.lane.b32.xlu0 %v809, 15
        %v961 = vpop.permute.xlu0 %960
        %962 = vrot.lane.b32.xlu0 %v812, 15
        %v963 = vpop.permute.xlu0 %962
        %964 = vrot.lane.b32.xlu0 %v815, 15
        %v965 = vpop.permute.xlu0 %964
        %966 = vrot.lane.b32.xlu0 %v818, 15
        %v967 = vpop.permute.xlu0 %966
        %968 = vrot.lane.b32.xlu0 %v937, 15
        %v969 = vpop.permute.xlu0 %968
        %v972 = vunpack.c.l.b16 %v366
        %v973 = vunpack.c.l.b16 %v367
        %v974 = vpack.c.b16 %v973, %v972
        %975 = vrot.lane.b32.xlu0 %v483, 18
        %v976 = vpop.permute.xlu0 %975
        %977 = vrot.lane.b32.xlu0 %v484, 18
        %v978 = vpop.permute.xlu0 %977
        %979 = vrot.lane.b32.xlu0 %v485, 18
        %v980 = vpop.permute.xlu0 %979
        %981 = vrot.lane.b32.xlu0 %v486, 18
        %v982 = vpop.permute.xlu0 %981
        %983 = vrot.lane.b32.xlu0 %v487, 18
        %v984 = vpop.permute.xlu0 %983
        %985 = vrot.lane.b32.xlu0 %v488, 18
        %v986 = vpop.permute.xlu0 %985
        %987 = vrot.lane.b32.xlu0 %v489, 18
        %v988 = vpop.permute.xlu0 %987
        %989 = vrot.lane.b32.xlu0 %v490, 18
        %v990 = vpop.permute.xlu0 %989
        %991 = vrot.lane.b32.xlu0 %v491, 18
        %v992 = vpop.permute.xlu0 %991
        %993 = vrot.lane.b32.xlu0 %v492, 18
        %v994 = vpop.permute.xlu0 %993
        %995 = vrot.lane.b32.xlu0 %v493, 18
        %v996 = vpop.permute.xlu0 %995
        %997 = vrot.lane.b32.xlu0 %v494, 18
        %v998 = vpop.permute.xlu0 %997
        %999 = vrot.lane.b32.xlu0 %v495, 18
        %v1000 = vpop.permute.xlu0 %999
        %1001 = vrot.lane.b32.xlu0 %v496, 18
        %v1002 = vpop.permute.xlu0 %1001
        %1003 = vrot.lane.b32.xlu0 %v855, 18
        %v1004 = vpop.permute.xlu0 %1003
        %1005 = vrot.lane.b32.xlu0 %v974, 18
        %v1006 = vpop.permute.xlu0 %1005
        %v1008 = vunpack.c.l.b16 %v368
        %v1009 = vpack.c.b16 %v1008, %v1008
        %v1011 = vshrl.u32 %v974, 16
        %v1013 = vshll.u32 %v974, 16
        %v1015 = vrot.slane %v1013, 1
        %v1016 = vor.u32 %v1011, %v1015
        %v1018 = vshll.u32 %v1009, 16
        %v1020 = vrot.slane %v1018, 1
        %v1021 = vsel %vm545, %v1016, %v1020
        %1022 = vrot.lane.b32.xlu0 %v581, 21
        %v1023 = vpop.permute.xlu0 %1022
        %1024 = vrot.lane.b32.xlu0 %v593, 21
        %v1025 = vpop.permute.xlu0 %1024
        %1026 = vrot.lane.b32.xlu0 %v605, 21
        %v1027 = vpop.permute.xlu0 %1026
        %1028 = vrot.lane.b32.xlu0 %v617, 21
        %v1029 = vpop.permute.xlu0 %1028
        %1030 = vrot.lane.b32.xlu0 %v629, 21
        %v1031 = vpop.permute.xlu0 %1030
        %1032 = vrot.lane.b32.xlu0 %v641, 21
        %v1033 = vpop.permute.xlu0 %1032
        %1034 = vrot.lane.b32.xlu0 %v653, 21
        %v1035 = vpop.permute.xlu0 %1034
        %1036 = vrot.lane.b32.xlu0 %v665, 21
        %v1037 = vpop.permute.xlu0 %1036
        %1038 = vrot.lane.b32.xlu0 %v677, 21
        %v1039 = vpop.permute.xlu0 %1038
        %1040 = vrot.lane.b32.xlu0 %v689, 21
        %v1041 = vpop.permute.xlu0 %1040
        %1042 = vrot.lane.b32.xlu0 %v701, 21
        %v1043 = vpop.permute.xlu0 %1042
        %1044 = vrot.lane.b32.xlu0 %v713, 21
        %v1045 = vpop.permute.xlu0 %1044
        %1046 = vrot.lane.b32.xlu0 %v725, 21
        %v1047 = vpop.permute.xlu0 %1046
        %1048 = vrot.lane.b32.xlu0 %v737, 21
        %v1049 = vpop.permute.xlu0 %1048
        %1050 = vrot.lane.b32.xlu0 %v902, 21
        %v1051 = vpop.permute.xlu0 %1050
        %1052 = vrot.lane.b32.xlu0 %v1021, 21
        %v1053 = vpop.permute.xlu0 %1052
        %v1054 = vrot.slane %v974, 1
        %v1055 = vrot.slane %v1009, 1
        %v1056 = vsel %vm770, %v1054, %v1055
        %1057 = vrot.lane.b32.xlu0 %v779, 24
        %v1058 = vpop.permute.xlu0 %1057
        %1059 = vrot.lane.b32.xlu0 %v782, 24
        %v1060 = vpop.permute.xlu0 %1059
        %1061 = vrot.lane.b32.xlu0 %v785, 24
        %v1062 = vpop.permute.xlu0 %1061
        %1063 = vrot.lane.b32.xlu0 %v788, 24
        %v1064 = vpop.permute.xlu0 %1063
        %1065 = vrot.lane.b32.xlu0 %v791, 24
        %v1066 = vpop.permute.xlu0 %1065
        %1067 = vrot.lane.b32.xlu0 %v794, 24
        %v1068 = vpop.permute.xlu0 %1067
        %1069 = vrot.lane.b32.xlu0 %v797, 24
        %v1070 = vpop.permute.xlu0 %1069
        %1071 = vrot.lane.b32.xlu0 %v800, 24
        %v1072 = vpop.permute.xlu0 %1071
        %1073 = vrot.lane.b32.xlu0 %v803, 24
        %v1074 = vpop.permute.xlu0 %1073
        %1075 = vrot.lane.b32.xlu0 %v806, 24
        %v1076 = vpop.permute.xlu0 %1075
        %1077 = vrot.lane.b32.xlu0 %v809, 24
        %v1078 = vpop.permute.xlu0 %1077
        %1079 = vrot.lane.b32.xlu0 %v812, 24
        %v1080 = vpop.permute.xlu0 %1079
        %1081 = vrot.lane.b32.xlu0 %v815, 24
        %v1082 = vpop.permute.xlu0 %1081
        %1083 = vrot.lane.b32.xlu0 %v818, 24
        %v1084 = vpop.permute.xlu0 %1083
        %1085 = vrot.lane.b32.xlu0 %v937, 24
        %v1086 = vpop.permute.xlu0 %1085
        %1087 = vrot.lane.b32.xlu0 %v1056, 24
        %v1088 = vpop.permute.xlu0 %1087
        %vm1089 = vcmask 23552
        %v1091 = vsel %vm1089, %v481, %v739
        %v1093 = vsel %vm1089, %v482, %v741
        %v1095 = vsel %vm1089, %v483, %v743
        %v1097 = vsel %vm1089, %v484, %v745
        %v1099 = vsel %vm1089, %v485, %v747
        %v1101 = vsel %vm1089, %v486, %v749
        %v1103 = vsel %vm1089, %v487, %v751
        %v1105 = vsel %vm1089, %v488, %v753
        %v1107 = vsel %vm1089, %v489, %v755
        %v1109 = vsel %vm1089, %v490, %v757
        %v1111 = vsel %vm1089, %v491, %v759
        %v1113 = vsel %vm1089, %v492, %v761
        %v1115 = vsel %vm1089, %v493, %v763
        %v1117 = vsel %vm1089, %v494, %v765
        %v1119 = vsel %vm1089, %v495, %v767
        %v1121 = vsel %vm1089, %v496, %v769
        %vm1122 = vcmask 48128
        %v1124 = vsel %vm1122, %v1091, %v820
        %v1126 = vsel %vm1122, %v1093, %v822
        %v1128 = vsel %vm1122, %v1095, %v824
        %v1130 = vsel %vm1122, %v1097, %v826
        %v1132 = vsel %vm1122, %v1099, %v828
        %v1134 = vsel %vm1122, %v1101, %v830
        %v1136 = vsel %vm1122, %v1103, %v832
        %v1138 = vsel %vm1122, %v1105, %v834
        %v1140 = vsel %vm1122, %v1107, %v836
        %v1142 = vsel %vm1122, %v1109, %v838
        %v1144 = vsel %vm1122, %v1111, %v840
        %v1146 = vsel %vm1122, %v1113, %v842
        %v1148 = vsel %vm1122, %v1115, %v844
        %v1150 = vsel %vm1122, %v1117, %v846
        %v1152 = vsel %vm1122, %v1119, %v848
        %v1154 = vsel %vm1122, %v1121, %v850
        %vm1155 = vcmask 72704
        %v1157 = vsel %vm1155, %v1124, %v857
        %v1159 = vsel %vm1155, %v1126, %v859
        %v1161 = vsel %vm1155, %v1128, %v861
        %v1163 = vsel %vm1155, %v1130, %v863
        %v1165 = vsel %vm1155, %v1132, %v865
        %v1167 = vsel %vm1155, %v1134, %v867
        %v1169 = vsel %vm1155, %v1136, %v869
        %v1171 = vsel %vm1155, %v1138, %v871
        %v1173 = vsel %vm1155, %v1140, %v873
        %v1175 = vsel %vm1155, %v1142, %v875
        %v1177 = vsel %vm1155, %v1144, %v877
        %v1179 = vsel %vm1155, %v1146, %v879
        %v1181 = vsel %vm1155, %v1148, %v881
        %v1183 = vsel %vm1155, %v1150, %v883
        %v1185 = vsel %vm1155, %v1152, %v885
        %v1187 = vsel %vm1155, %v1154, %v887
        %vm1188 = vcmask 97280
        %v1190 = vsel %vm1188, %v1157, %v904
        %v1192 = vsel %vm1188, %v1159, %v906
        %v1194 = vsel %vm1188, %v1161, %v908
        %v1196 = vsel %vm1188, %v1163, %v910
        %v1198 = vsel %vm1188, %v1165, %v912
        %v1200 = vsel %vm1188, %v1167, %v914
        %v1202 = vsel %vm1188, %v1169, %v916
        %v1204 = vsel %vm1188, %v1171, %v918
        %v1206 = vsel %vm1188, %v1173, %v920
        %v1208 = vsel %vm1188, %v1175, %v922
        %v1210 = vsel %vm1188, %v1177, %v924
        %v1212 = vsel %vm1188, %v1179, %v926
        %v1214 = vsel %vm1188, %v1181, %v928
        %v1216 = vsel %vm1188, %v1183, %v930
        %v1218 = vsel %vm1188, %v1185, %v932
        %v1220 = vsel %vm1188, %v1187, %v934
        %vm1221 = vcmask 121856
        %v1223 = vsel %vm1221, %v1190, %v939
        %v1225 = vsel %vm1221, %v1192, %v941
        %v1227 = vsel %vm1221, %v1194, %v943
        %v1229 = vsel %vm1221, %v1196, %v945
        %v1231 = vsel %vm1221, %v1198, %v947
        %v1233 = vsel %vm1221, %v1200, %v949
        %v1235 = vsel %vm1221, %v1202, %v951
        %v1237 = vsel %vm1221, %v1204, %v953
        %v1239 = vsel %vm1221, %v1206, %v955
        %v1241 = vsel %vm1221, %v1208, %v957
        %v1243 = vsel %vm1221, %v1210, %v959
        %v1245 = vsel %vm1221, %v1212, %v961
        %v1247 = vsel %vm1221, %v1214, %v963
        %v1249 = vsel %vm1221, %v1216, %v965
        %v1251 = vsel %vm1221, %v1218, %v967
        %v1253 = vsel %vm1221, %v1220, %v969
        %vm1254 = vcmask 146432
        %v1256 = vsel %vm1254, %v1223, %v976
        %v1258 = vsel %vm1254, %v1225, %v978
        %v1260 = vsel %vm1254, %v1227, %v980
        %v1262 = vsel %vm1254, %v1229, %v982
        %v1264 = vsel %vm1254, %v1231, %v984
        %v1266 = vsel %vm1254, %v1233, %v986
        %v1268 = vsel %vm1254, %v1235, %v988
        %v1270 = vsel %vm1254, %v1237, %v990
        %v1272 = vsel %vm1254, %v1239, %v992
        %v1274 = vsel %vm1254, %v1241, %v994
        %v1276 = vsel %vm1254, %v1243, %v996
        %v1278 = vsel %vm1254, %v1245, %v998
        %v1280 = vsel %vm1254, %v1247, %v1000
        %v1282 = vsel %vm1254, %v1249, %v1002
        %v1284 = vsel %vm1254, %v1251, %v1004
        %v1286 = vsel %vm1254, %v1253, %v1006
        %vm1287 = vcmask 171008
        %v1289 = vsel %vm1287, %v1256, %v1023
        %v1291 = vsel %vm1287, %v1258, %v1025
        %v1293 = vsel %vm1287, %v1260, %v1027
        %v1295 = vsel %vm1287, %v1262, %v1029
        %v1297 = vsel %vm1287, %v1264, %v1031
        %v1299 = vsel %vm1287, %v1266, %v1033
        %v1301 = vsel %vm1287, %v1268, %v1035
        %v1303 = vsel %vm1287, %v1270, %v1037
        %v1305 = vsel %vm1287, %v1272, %v1039
        %v1307 = vsel %vm1287, %v1274, %v1041
        %v1309 = vsel %vm1287, %v1276, %v1043
        %v1311 = vsel %vm1287, %v1278, %v1045
        %v1313 = vsel %vm1287, %v1280, %v1047
        %v1315 = vsel %vm1287, %v1282, %v1049
        %v1317 = vsel %vm1287, %v1284, %v1051
        %v1319 = vsel %vm1287, %v1286, %v1053
        %vm1320 = vcmask 195584
        %v1322 = vsel %vm1320, %v1289, %v1058
        %v1324 = vsel %vm1320, %v1291, %v1060
        %v1326 = vsel %vm1320, %v1293, %v1062
        %v1328 = vsel %vm1320, %v1295, %v1064
        %v1330 = vsel %vm1320, %v1297, %v1066
        %v1332 = vsel %vm1320, %v1299, %v1068
        %v1334 = vsel %vm1320, %v1301, %v1070
        %v1336 = vsel %vm1320, %v1303, %v1072
        %v1338 = vsel %vm1320, %v1305, %v1074
        %v1340 = vsel %vm1320, %v1307, %v1076
        %v1342 = vsel %vm1320, %v1309, %v1078
        %v1344 = vsel %vm1320, %v1311, %v1080
        %v1346 = vsel %vm1320, %v1313, %v1082
        %v1348 = vsel %vm1320, %v1315, %v1084
        %v1350 = vsel %vm1320, %v1317, %v1086
        %v1352 = vsel %vm1320, %v1319, %v1088
        %vm1353 = vcmask 220160
        %v1355 = vsel %vm1353, %v1322, 0
        %v1357 = vsel %vm1353, %v1324, 0
        %v1359 = vsel %vm1353, %v1326, 0
        %v1361 = vsel %vm1353, %v1328, 0
        %v1363 = vsel %vm1353, %v1330, 0
        %v1365 = vsel %vm1353, %v1332, 0
        %v1367 = vsel %vm1353, %v1334, 0
        %v1369 = vsel %vm1353, %v1336, 0
        %v1371 = vsel %vm1353, %v1338, 0
        %v1373 = vsel %vm1353, %v1340, 0
        %v1375 = vsel %vm1353, %v1342, 0
        %v1377 = vsel %vm1353, %v1344, 0
        %v1379 = vsel %vm1353, %v1346, 0
        %v1381 = vsel %vm1353, %v1348, 0
        %v1383 = vsel %vm1353, %v1350, 0
        %v1385 = vsel %vm1353, %v1352, 0
        %v1387 = vld [vmem:[%s2] sm:$0xf]
        %v1388 = vld [vmem:[%s2 + $0x4] sm:$0xf]
        %v1389 = vld [vmem:[%s2 + $0x8] sm:$0xf]
        %v1390 = vld [vmem:[%s2 + $0xc] sm:$0xf]
        %v1391 = vld [vmem:[%s2 + $0x10] sm:$0xf]
        %v1392 = vld [vmem:[%s2 + $0x14] sm:$0xf]
        %v1393 = vld [vmem:[%s2 + $0x18] sm:$0xf]
        %v1394 = vld [vmem:[%s2 + $0x1c] sm:$0xf]
        %v1395 = vld [vmem:[%s2 + $0x20] sm:$0xf]
        %v1396 = vld [vmem:[%s2 + $0x24] sm:$0xf]
        %v1397 = vld [vmem:[%s2 + $0x28] sm:$0xf]
        %v1398 = vld [vmem:[%s2 + $0x2c] sm:$0xf]
        %v1399 = vld [vmem:[%s2 + $0x30] sm:$0xf]
        %v1400 = vld [vmem:[%s2 + $0x34] sm:$0xf]
        %v1401 = vld [vmem:[%s2 + $0x38] sm:$0xf]
        %v1402 = vld [vmem:[%s2 + $0x3c] sm:$0xf]
        %v1403 = vld [vmem:[%s3] sm:$0x1]
        %v1405 = vlaneseq
        %v1406 = vshrl.u32 %v1405, 7
        %v1407 = vsub.s32 0, %v1406
        %v1408 = vrot.slane %v1403, %v1407
        %v1426 = vunpack.c.l.b16 %v1387
        %v1427 = vunpack.c.l.b16 %v1388
        %v1428 = vunpack.c.l.b16 %v1389
        %v1429 = vunpack.c.l.b16 %v1390
        %v1430 = vunpack.c.l.b16 %v1391
        %v1431 = vunpack.c.l.b16 %v1392
        %v1432 = vunpack.c.l.b16 %v1393
        %v1433 = vunpack.c.l.b16 %v1394
        %v1434 = vunpack.c.l.b16 %v1395
        %v1435 = vunpack.c.l.b16 %v1396
        %v1436 = vunpack.c.l.b16 %v1397
        %v1437 = vunpack.c.l.b16 %v1398
        %v1438 = vunpack.c.l.b16 %v1399
        %v1439 = vunpack.c.l.b16 %v1400
        %v1440 = vunpack.c.l.b16 %v1401
        %v1441 = vunpack.c.l.b16 %v1402
        %v1442 = vpack.c.b16 %v1427, %v1426
        %v1443 = vpack.c.b16 %v1429, %v1428
        %v1444 = vpack.c.b16 %v1431, %v1430
        %v1445 = vpack.c.b16 %v1433, %v1432
        %v1446 = vpack.c.b16 %v1435, %v1434
        %v1447 = vpack.c.b16 %v1437, %v1436
        %v1448 = vpack.c.b16 %v1439, %v1438
        %v1449 = vpack.c.b16 %v1441, %v1440
        %1458 = vmatprep.subr.bf16.mxu0 0
        %1459 = vmatpush1.bf16.msra.mxu0 %v1449
        %1460 = vmatprep.subr.bf16.mxu0 0
        %1461 = vmatpush1.bf16.msra.mxu0 %v1448
        %1462 = vmatprep.subr.bf16.mxu0 0
        %1463 = vmatpush1.bf16.msra.mxu0 %v1447
        %1464 = vmatprep.subr.bf16.mxu0 0
        %1465 = vmatpush1.bf16.msra.mxu0 %v1446
        %1466 = vmatprep.subr.bf16.mxu0 0
        %1467 = vmatpush1.bf16.msra.mxu0 %v1445
        %1468 = vmatprep.subr.bf16.mxu0 0
        %1469 = vmatpush1.bf16.msra.mxu0 %v1444
        %1470 = vmatprep.subr.bf16.mxu0 0
        %1471 = vmatpush1.bf16.msra.mxu0 %v1443
        %1472 = vmatprep.subr.bf16.mxu0 0
        %1473 = vmatpush1.bf16.msra.mxu0 %v1442
        %1474 = vmatprep.subr.bf16.mxu0 0
        %1475 = vmatpush2.bf16.msra.mxu0 0
        %1476 = vmatprep.subr.bf16.mxu0 0
        %1477 = vmatpush2.bf16.msra.mxu0 0
        %1478 = vmatprep.subr.bf16.mxu0 0
        %1479 = vmatpush2.bf16.msra.mxu0 0
        %1480 = vmatprep.subr.bf16.mxu0 0
        %1481 = vmatpush2.bf16.msra.mxu0 0
        %1482 = vmatprep.subr.bf16.mxu0 0
        %1483 = vmatpush2.bf16.msra.mxu0 0
        %1484 = vmatprep.subr.bf16.mxu0 0
        %1485 = vmatpush2.bf16.msra.mxu0 0
        %1486 = vmatprep.subr.bf16.mxu0 0
        %1487 = vmatpush2.bf16.msra.mxu0 0
        %1488 = vmatprep.subr.bf16.mxu0 0
        %1489 = vmatpush2.bf16.msra.mxu0 0
        %1490 = vmatprep.mubr.bf16.mxu0 0
        %1491 = vmatmul.mubr.bf16.gmra.mxu0 %v1355
        %v1492 = vpop.f32.mrf.mxu0
        %v1493 = vadd.f32 %v1408, %v1492
        %v1494 = vpop.f32.mrf.mxu0
        %v1495 = vpop.f32.mrf.mxu0
        %v1496 = vadd.f32 %v1408, %v1495
        %v1497 = vpop.f32.mrf.mxu0
        %1498 = vmatprep.mubr.bf16.mxu0 0
        %1499 = vmatmul.mubr.bf16.gmra.mxu0 %v1357
        %v1500 = vpop.f32.mrf.mxu0
        %v1501 = vadd.f32 %v1408, %v1500
        %v1502 = vpop.f32.mrf.mxu0
        %v1503 = vpop.f32.mrf.mxu0
        %v1504 = vadd.f32 %v1408, %v1503
        %v1505 = vpop.f32.mrf.mxu0
        %1506 = vmatprep.mubr.bf16.mxu0 0
        %1507 = vmatmul.mubr.bf16.gmra.mxu0 %v1359
        %v1508 = vpop.f32.mrf.mxu0
        %v1509 = vadd.f32 %v1408, %v1508
        %v1510 = vpop.f32.mrf.mxu0
        %v1511 = vpop.f32.mrf.mxu0
        %v1512 = vadd.f32 %v1408, %v1511
        %v1513 = vpop.f32.mrf.mxu0
        %1514 = vmatprep.mubr.bf16.mxu0 0
        %1515 = vmatmul.mubr.bf16.gmra.mxu0 %v1361
        %v1516 = vpop.f32.mrf.mxu0
        %v1517 = vadd.f32 %v1408, %v1516
        %v1518 = vpop.f32.mrf.mxu0
        %v1519 = vpop.f32.mrf.mxu0
        %v1520 = vadd.f32 %v1408, %v1519
        %v1521 = vpop.f32.mrf.mxu0
        %1522 = vmatprep.mubr.bf16.mxu0 0
        %1523 = vmatmul.mubr.bf16.gmra.mxu0 %v1363
        %v1524 = vpop.f32.mrf.mxu0
        %v1525 = vadd.f32 %v1408, %v1524
        %v1526 = vpop.f32.mrf.mxu0
        %v1527 = vpop.f32.mrf.mxu0
        %v1528 = vadd.f32 %v1408, %v1527
        %v1529 = vpop.f32.mrf.mxu0
        %1530 = vmatprep.mubr.bf16.mxu0 0
        %1531 = vmatmul.mubr.bf16.gmra.mxu0 %v1365
        %v1532 = vpop.f32.mrf.mxu0
        %v1533 = vadd.f32 %v1408, %v1532
        %v1534 = vpop.f32.mrf.mxu0
        %v1535 = vpop.f32.mrf.mxu0
        %v1536 = vadd.f32 %v1408, %v1535
        %v1537 = vpop.f32.mrf.mxu0
        %1538 = vmatprep.mubr.bf16.mxu0 0
        %1539 = vmatmul.mubr.bf16.gmra.mxu0 %v1367
        %v1540 = vpop.f32.mrf.mxu0
        %v1541 = vadd.f32 %v1408, %v1540
        %v1542 = vpop.f32.mrf.mxu0
        %v1543 = vpop.f32.mrf.mxu0
        %v1544 = vadd.f32 %v1408, %v1543
        %v1545 = vpop.f32.mrf.mxu0
        %1546 = vmatprep.mubr.bf16.mxu0 0
        %1547 = vmatmul.mubr.bf16.gmra.mxu0 %v1369
        %v1548 = vpop.f32.mrf.mxu0
        %v1549 = vadd.f32 %v1408, %v1548
        %v1550 = vpop.f32.mrf.mxu0
        %v1551 = vpop.f32.mrf.mxu0
        %v1552 = vadd.f32 %v1408, %v1551
        %v1553 = vpop.f32.mrf.mxu0
        %1554 = vmatprep.mubr.bf16.mxu0 0
        %1555 = vmatmul.mubr.bf16.gmra.mxu0 %v1371
        %v1556 = vpop.f32.mrf.mxu0
        %v1557 = vadd.f32 %v1408, %v1556
        %v1558 = vpop.f32.mrf.mxu0
        %v1559 = vpop.f32.mrf.mxu0
        %v1560 = vadd.f32 %v1408, %v1559
        %v1561 = vpop.f32.mrf.mxu0
        %1562 = vmatprep.mubr.bf16.mxu0 0
        %1563 = vmatmul.mubr.bf16.gmra.mxu0 %v1373
        %v1564 = vpop.f32.mrf.mxu0
        %v1565 = vadd.f32 %v1408, %v1564
        %v1566 = vpop.f32.mrf.mxu0
        %v1567 = vpop.f32.mrf.mxu0
        %v1568 = vadd.f32 %v1408, %v1567
        %v1569 = vpop.f32.mrf.mxu0
        %1570 = vmatprep.mubr.bf16.mxu0 0
        %1571 = vmatmul.mubr.bf16.gmra.mxu0 %v1375
        %v1572 = vpop.f32.mrf.mxu0
        %v1573 = vadd.f32 %v1408, %v1572
        %v1574 = vpop.f32.mrf.mxu0
        %v1575 = vpop.f32.mrf.mxu0
        %v1576 = vadd.f32 %v1408, %v1575
        %v1577 = vpop.f32.mrf.mxu0
        %1578 = vmatprep.mubr.bf16.mxu0 0
        %1579 = vmatmul.mubr.bf16.gmra.mxu0 %v1377
        %v1580 = vpop.f32.mrf.mxu0
        %v1581 = vadd.f32 %v1408, %v1580
        %v1582 = vpop.f32.mrf.mxu0
        %v1583 = vpop.f32.mrf.mxu0
        %v1584 = vadd.f32 %v1408, %v1583
        %v1585 = vpop.f32.mrf.mxu0
        %1586 = vmatprep.mubr.bf16.mxu0 0
        %1587 = vmatmul.mubr.bf16.gmra.mxu0 %v1379
        %v1588 = vpop.f32.mrf.mxu0
        %v1589 = vadd.f32 %v1408, %v1588
        %v1590 = vpop.f32.mrf.mxu0
        %v1591 = vpop.f32.mrf.mxu0
        %v1592 = vadd.f32 %v1408, %v1591
        %v1593 = vpop.f32.mrf.mxu0
        %1594 = vmatprep.mubr.bf16.mxu0 0
        %1595 = vmatmul.mubr.bf16.gmra.mxu0 %v1381
        %v1596 = vpop.f32.mrf.mxu0
        %v1597 = vadd.f32 %v1408, %v1596
        %v1598 = vpop.f32.mrf.mxu0
        %v1599 = vpop.f32.mrf.mxu0
        %v1600 = vadd.f32 %v1408, %v1599
        %v1601 = vpop.f32.mrf.mxu0
        %1602 = vmatprep.mubr.bf16.mxu0 0
        %1603 = vmatmul.mubr.bf16.gmra.mxu0 %v1383
        %v1604 = vpop.f32.mrf.mxu0
        %v1605 = vadd.f32 %v1408, %v1604
        %v1606 = vpop.f32.mrf.mxu0
        %v1607 = vpop.f32.mrf.mxu0
        %v1608 = vadd.f32 %v1408, %v1607
        %v1609 = vpop.f32.mrf.mxu0
        %1610 = vmatprep.mubr.bf16.mxu0 0
        %1611 = vmatmul.mubr.bf16.gmra.mxu0 %v1385
        %v1612 = vpop.f32.mrf.mxu0
        %v1613 = vadd.f32 %v1408, %v1612
        %v1614 = vpop.f32.mrf.mxu0
        %v1615 = vpop.f32.mrf.mxu0
        %v1616 = vadd.f32 %v1408, %v1615
        %v1617 = vpop.f32.mrf.mxu0
        %1618 = vdwg.mxu0
        %v1619 = vmax.f32 %v1493, 0.0
        %v1620 = vmax.f32 %v1496, 0.0
        %v1621 = vmax.f32 %v1501, 0.0
        %v1622 = vmax.f32 %v1504, 0.0
        %v1623 = vmax.f32 %v1509, 0.0
        %v1624 = vmax.f32 %v1512, 0.0
        %v1625 = vmax.f32 %v1517, 0.0
        %v1626 = vmax.f32 %v1520, 0.0
        %v1627 = vmax.f32 %v1525, 0.0
        %v1628 = vmax.f32 %v1528, 0.0
        %v1629 = vmax.f32 %v1533, 0.0
        %v1630 = vmax.f32 %v1536, 0.0
        %v1631 = vmax.f32 %v1541, 0.0
        %v1632 = vmax.f32 %v1544, 0.0
        %v1633 = vmax.f32 %v1549, 0.0
        %v1634 = vmax.f32 %v1552, 0.0
        %v1635 = vmax.f32 %v1557, 0.0
        %v1636 = vmax.f32 %v1560, 0.0
        %v1637 = vmax.f32 %v1565, 0.0
        %v1638 = vmax.f32 %v1568, 0.0
        %v1639 = vmax.f32 %v1573, 0.0
        %v1640 = vmax.f32 %v1576, 0.0
        %v1641 = vmax.f32 %v1581, 0.0
        %v1642 = vmax.f32 %v1584, 0.0
        %v1643 = vmax.f32 %v1589, 0.0
        %v1644 = vmax.f32 %v1592, 0.0
        %v1645 = vmax.f32 %v1597, 0.0
        %v1646 = vmax.f32 %v1600, 0.0
        %v1647 = vmax.f32 %v1605, 0.0
        %v1648 = vmax.f32 %v1608, 0.0
        %v1649 = vmax.f32 %v1613, 0.0
        %v1650 = vmax.f32 %v1616, 0.0
        %v1651 = vpack.c.bf16 %v1620, %v1619
        %v1652 = vpack.c.bf16 %v1622, %v1621
        %v1653 = vpack.c.bf16 %v1624, %v1623
        %v1654 = vpack.c.bf16 %v1626, %v1625
        %v1655 = vpack.c.bf16 %v1628, %v1627
        %v1656 = vpack.c.bf16 %v1630, %v1629
        %v1657 = vpack.c.bf16 %v1632, %v1631
        %v1658 = vpack.c.bf16 %v1634, %v1633
        %v1659 = vpack.c.bf16 %v1636, %v1635
        %v1660 = vpack.c.bf16 %v1638, %v1637
        %v1661 = vpack.c.bf16 %v1640, %v1639
        %v1662 = vpack.c.bf16 %v1642, %v1641
        %v1663 = vpack.c.bf16 %v1644, %v1643
        %v1664 = vpack.c.bf16 %v1646, %v1645
        %v1665 = vpack.c.bf16 %v1648, %v1647
        %v1666 = vpack.c.bf16 %v1650, %v1649
        %v1667 = vld [vmem:[%s4] sm:$0xf]
        %v1668 = vld [vmem:[%s4 + $0x4] sm:$0xf]
        %v1669 = vld [vmem:[%s4 + $0x8] sm:$0xf]
        %v1670 = vld [vmem:[%s4 + $0xc] sm:$0xf]
        %v1671 = vld [vmem:[%s4 + $0x10] sm:$0xf]
        %v1672 = vld [vmem:[%s4 + $0x14] sm:$0xf]
        %v1673 = vld [vmem:[%s4 + $0x18] sm:$0xf]
        %v1674 = vld [vmem:[%s4 + $0x1c] sm:$0xf]
        %v1675 = vld [vmem:[%s4 + $0x20] sm:$0xf]
        %v1676 = vld [vmem:[%s4 + $0x24] sm:$0xf]
        %v1677 = vld [vmem:[%s4 + $0x28] sm:$0xf]
        %v1678 = vld [vmem:[%s4 + $0x2c] sm:$0xf]
        %v1679 = vld [vmem:[%s4 + $0x30] sm:$0xf]
        %v1680 = vld [vmem:[%s4 + $0x34] sm:$0xf]
        %v1681 = vld [vmem:[%s4 + $0x38] sm:$0xf]
        %v1682 = vld [vmem:[%s4 + $0x3c] sm:$0xf]
        %v1683 = vld [vmem:[%s5] sm:$0x1]
        %v1685 = vlaneseq
        %v1686 = vshrl.u32 %v1685, 7
        %v1687 = vsub.s32 0, %v1686
        %v1688 = vrot.slane %v1683, %v1687
        %v1706 = vunpack.c.l.b16 %v1667
        %v1707 = vunpack.c.l.b16 %v1668
        %v1708 = vunpack.c.l.b16 %v1669
        %v1709 = vunpack.c.l.b16 %v1670
        %v1710 = vunpack.c.l.b16 %v1671
        %v1711 = vunpack.c.l.b16 %v1672
        %v1712 = vunpack.c.l.b16 %v1673
        %v1713 = vunpack.c.l.b16 %v1674
        %v1714 = vunpack.c.l.b16 %v1675
        %v1715 = vunpack.c.l.b16 %v1676
        %v1716 = vunpack.c.l.b16 %v1677
        %v1717 = vunpack.c.l.b16 %v1678
        %v1718 = vunpack.c.l.b16 %v1679
        %v1719 = vunpack.c.l.b16 %v1680
        %v1720 = vunpack.c.l.b16 %v1681
        %v1721 = vunpack.c.l.b16 %v1682
        %v1722 = vpack.c.b16 %v1707, %v1706
        %v1723 = vpack.c.b16 %v1709, %v1708
        %v1724 = vpack.c.b16 %v1711, %v1710
        %v1725 = vpack.c.b16 %v1713, %v1712
        %v1726 = vpack.c.b16 %v1715, %v1714
        %v1727 = vpack.c.b16 %v1717, %v1716
        %v1728 = vpack.c.b16 %v1719, %v1718
        %v1729 = vpack.c.b16 %v1721, %v1720
        %1738 = vmatprep.subr.bf16.mxu0 0
        %1739 = vmatpush1.bf16.msra.mxu0 %v1729
        %1740 = vmatprep.subr.bf16.mxu0 0
        %1741 = vmatpush1.bf16.msra.mxu0 %v1728
        %1742 = vmatprep.subr.bf16.mxu0 0
        %1743 = vmatpush1.bf16.msra.mxu0 %v1727
        %1744 = vmatprep.subr.bf16.mxu0 0
        %1745 = vmatpush1.bf16.msra.mxu0 %v1726
        %1746 = vmatprep.subr.bf16.mxu0 0
        %1747 = vmatpush1.bf16.msra.mxu0 %v1725
        %1748 = vmatprep.subr.bf16.mxu0 0
        %1749 = vmatpush1.bf16.msra.mxu0 %v1724
        %1750 = vmatprep.subr.bf16.mxu0 0
        %1751 = vmatpush1.bf16.msra.mxu0 %v1723
        %1752 = vmatprep.subr.bf16.mxu0 0
        %1753 = vmatpush1.bf16.msra.mxu0 %v1722
        %1754 = vmatprep.subr.bf16.mxu0 0
        %1755 = vmatpush2.bf16.msra.mxu0 0
        %1756 = vmatprep.subr.bf16.mxu0 0
        %1757 = vmatpush2.bf16.msra.mxu0 0
        %1758 = vmatprep.subr.bf16.mxu0 0
        %1759 = vmatpush2.bf16.msra.mxu0 0
        %1760 = vmatprep.subr.bf16.mxu0 0
        %1761 = vmatpush2.bf16.msra.mxu0 0
        %1762 = vmatprep.subr.bf16.mxu0 0
        %1763 = vmatpush2.bf16.msra.mxu0 0
        %1764 = vmatprep.subr.bf16.mxu0 0
        %1765 = vmatpush2.bf16.msra.mxu0 0
        %1766 = vmatprep.subr.bf16.mxu0 0
        %1767 = vmatpush2.bf16.msra.mxu0 0
        %1768 = vmatprep.subr.bf16.mxu0 0
        %1769 = vmatpush2.bf16.msra.mxu0 0
        %1770 = vmatprep.mubr.bf16.mxu0 0
        %1771 = vmatmul.mubr.bf16.gmra.mxu0 %v1651
        %v1772 = vpop.f32.mrf.mxu0
        %v1773 = vadd.f32 %v1688, %v1772
        %v1774 = vpop.f32.mrf.mxu0
        %v1775 = vpop.f32.mrf.mxu0
        %v1776 = vadd.f32 %v1688, %v1775
        %v1777 = vpop.f32.mrf.mxu0
        %1778 = vmatprep.mubr.bf16.mxu0 0
        %1779 = vmatmul.mubr.bf16.gmra.mxu0 %v1652
        %v1780 = vpop.f32.mrf.mxu0
        %v1781 = vadd.f32 %v1688, %v1780
        %v1782 = vpop.f32.mrf.mxu0
        %v1783 = vpop.f32.mrf.mxu0
        %v1784 = vadd.f32 %v1688, %v1783
        %v1785 = vpop.f32.mrf.mxu0
        %1786 = vmatprep.mubr.bf16.mxu0 0
        %1787 = vmatmul.mubr.bf16.gmra.mxu0 %v1653
        %v1788 = vpop.f32.mrf.mxu0
        %v1789 = vadd.f32 %v1688, %v1788
        %v1790 = vpop.f32.mrf.mxu0
        %v1791 = vpop.f32.mrf.mxu0
        %v1792 = vadd.f32 %v1688, %v1791
        %v1793 = vpop.f32.mrf.mxu0
        %1794 = vmatprep.mubr.bf16.mxu0 0
        %1795 = vmatmul.mubr.bf16.gmra.mxu0 %v1654
        %v1796 = vpop.f32.mrf.mxu0
        %v1797 = vadd.f32 %v1688, %v1796
        %v1798 = vpop.f32.mrf.mxu0
        %v1799 = vpop.f32.mrf.mxu0
        %v1800 = vadd.f32 %v1688, %v1799
        %v1801 = vpop.f32.mrf.mxu0
        %1802 = vmatprep.mubr.bf16.mxu0 0
        %1803 = vmatmul.mubr.bf16.gmra.mxu0 %v1655
        %v1804 = vpop.f32.mrf.mxu0
        %v1805 = vadd.f32 %v1688, %v1804
        %v1806 = vpop.f32.mrf.mxu0
        %v1807 = vpop.f32.mrf.mxu0
        %v1808 = vadd.f32 %v1688, %v1807
        %v1809 = vpop.f32.mrf.mxu0
        %1810 = vmatprep.mubr.bf16.mxu0 0
        %1811 = vmatmul.mubr.bf16.gmra.mxu0 %v1656
        %v1812 = vpop.f32.mrf.mxu0
        %v1813 = vadd.f32 %v1688, %v1812
        %v1814 = vpop.f32.mrf.mxu0
        %v1815 = vpop.f32.mrf.mxu0
        %v1816 = vadd.f32 %v1688, %v1815
        %v1817 = vpop.f32.mrf.mxu0
        %1818 = vmatprep.mubr.bf16.mxu0 0
        %1819 = vmatmul.mubr.bf16.gmra.mxu0 %v1657
        %v1820 = vpop.f32.mrf.mxu0
        %v1821 = vadd.f32 %v1688, %v1820
        %v1822 = vpop.f32.mrf.mxu0
        %v1823 = vpop.f32.mrf.mxu0
        %v1824 = vadd.f32 %v1688, %v1823
        %v1825 = vpop.f32.mrf.mxu0
        %1826 = vmatprep.mubr.bf16.mxu0 0
        %1827 = vmatmul.mubr.bf16.gmra.mxu0 %v1658
        %v1828 = vpop.f32.mrf.mxu0
        %v1829 = vadd.f32 %v1688, %v1828
        %v1830 = vpop.f32.mrf.mxu0
        %v1831 = vpop.f32.mrf.mxu0
        %v1832 = vadd.f32 %v1688, %v1831
        %v1833 = vpop.f32.mrf.mxu0
        %1834 = vmatprep.mubr.bf16.mxu0 0
        %1835 = vmatmul.mubr.bf16.gmra.mxu0 %v1659
        %v1836 = vpop.f32.mrf.mxu0
        %v1837 = vadd.f32 %v1688, %v1836
        %v1838 = vpop.f32.mrf.mxu0
        %v1839 = vpop.f32.mrf.mxu0
        %v1840 = vadd.f32 %v1688, %v1839
        %v1841 = vpop.f32.mrf.mxu0
        %1842 = vmatprep.mubr.bf16.mxu0 0
        %1843 = vmatmul.mubr.bf16.gmra.mxu0 %v1660
        %v1844 = vpop.f32.mrf.mxu0
        %v1845 = vadd.f32 %v1688, %v1844
        %v1846 = vpop.f32.mrf.mxu0
        %v1847 = vpop.f32.mrf.mxu0
        %v1848 = vadd.f32 %v1688, %v1847
        %v1849 = vpop.f32.mrf.mxu0
        %1850 = vmatprep.mubr.bf16.mxu0 0
        %1851 = vmatmul.mubr.bf16.gmra.mxu0 %v1661
        %v1852 = vpop.f32.mrf.mxu0
        %v1853 = vadd.f32 %v1688, %v1852
        %v1854 = vpop.f32.mrf.mxu0
        %v1855 = vpop.f32.mrf.mxu0
        %v1856 = vadd.f32 %v1688, %v1855
        %v1857 = vpop.f32.mrf.mxu0
        %1858 = vmatprep.mubr.bf16.mxu0 0
        %1859 = vmatmul.mubr.bf16.gmra.mxu0 %v1662
        %v1860 = vpop.f32.mrf.mxu0
        %v1861 = vadd.f32 %v1688, %v1860
        %v1862 = vpop.f32.mrf.mxu0
        %v1863 = vpop.f32.mrf.mxu0
        %v1864 = vadd.f32 %v1688, %v1863
        %v1865 = vpop.f32.mrf.mxu0
        %1866 = vmatprep.mubr.bf16.mxu0 0
        %1867 = vmatmul.mubr.bf16.gmra.mxu0 %v1663
        %v1868 = vpop.f32.mrf.mxu0
        %v1869 = vadd.f32 %v1688, %v1868
        %v1870 = vpop.f32.mrf.mxu0
        %v1871 = vpop.f32.mrf.mxu0
        %v1872 = vadd.f32 %v1688, %v1871
        %v1873 = vpop.f32.mrf.mxu0
        %1874 = vmatprep.mubr.bf16.mxu0 0
        %1875 = vmatmul.mubr.bf16.gmra.mxu0 %v1664
        %v1876 = vpop.f32.mrf.mxu0
        %v1877 = vadd.f32 %v1688, %v1876
        %v1878 = vpop.f32.mrf.mxu0
        %v1879 = vpop.f32.mrf.mxu0
        %v1880 = vadd.f32 %v1688, %v1879
        %v1881 = vpop.f32.mrf.mxu0
        %1882 = vmatprep.mubr.bf16.mxu0 0
        %1883 = vmatmul.mubr.bf16.gmra.mxu0 %v1665
        %v1884 = vpop.f32.mrf.mxu0
        %v1885 = vadd.f32 %v1688, %v1884
        %v1886 = vpop.f32.mrf.mxu0
        %v1887 = vpop.f32.mrf.mxu0
        %v1888 = vadd.f32 %v1688, %v1887
        %v1889 = vpop.f32.mrf.mxu0
        %1890 = vmatprep.mubr.bf16.mxu0 0
        %1891 = vmatmul.mubr.bf16.gmra.mxu0 %v1666
        %v1892 = vpop.f32.mrf.mxu0
        %v1893 = vadd.f32 %v1688, %v1892
        %v1894 = vpop.f32.mrf.mxu0
        %v1895 = vpop.f32.mrf.mxu0
        %v1896 = vadd.f32 %v1688, %v1895
        %v1897 = vpop.f32.mrf.mxu0
        %1898 = vdwg.mxu0
        %1899 = vst [vmem:[%s324] sm:$0xff] %v1773
        %1900 = vst [vmem:[%s324 + $0x8] sm:$0xff] %v1776
        %1901 = vst [vmem:[%s324 + $0x10] sm:$0xff] %v1781
        %1902 = vst [vmem:[%s324 + $0x18] sm:$0xff] %v1784
        %1903 = vst [vmem:[%s324 + $0x20] sm:$0xff] %v1789
        %1904 = vst [vmem:[%s324 + $0x28] sm:$0xff] %v1792
        %1905 = vst [vmem:[%s324 + $0x30] sm:$0xff] %v1797
        %1906 = vst [vmem:[%s324 + $0x38] sm:$0xff] %v1800
        %1907 = vst [vmem:[%s324 + $0x40] sm:$0xff] %v1805
        %1908 = vst [vmem:[%s324 + $0x48] sm:$0xff] %v1808
        %1909 = vst [vmem:[%s324 + $0x50] sm:$0xff] %v1813
        %1910 = vst [vmem:[%s324 + $0x58] sm:$0xff] %v1816
        %1911 = vst [vmem:[%s324 + $0x60] sm:$0xff] %v1821
        %1912 = vst [vmem:[%s324 + $0x68] sm:$0xff] %v1824
        %1913 = vst [vmem:[%s324 + $0x70] sm:$0xff] %v1829
        %1914 = vst [vmem:[%s324 + $0x78] sm:$0xff] %v1832
        %1915 = vst [vmem:[%s324 + $0x80] sm:$0xff] %v1837
        %1916 = vst [vmem:[%s324 + $0x88] sm:$0xff] %v1840
        %1917 = vst [vmem:[%s324 + $0x90] sm:$0xff] %v1845
        %1918 = vst [vmem:[%s324 + $0x98] sm:$0xff] %v1848
        %1919 = vst [vmem:[%s324 + $0xa0] sm:$0xff] %v1853
        %1920 = vst [vmem:[%s324 + $0xa8] sm:$0xff] %v1856
        %1921 = vst [vmem:[%s324 + $0xb0] sm:$0xff] %v1861
        %1922 = vst [vmem:[%s324 + $0xb8] sm:$0xff] %v1864
        %1923 = vst [vmem:[%s324 + $0xc0] sm:$0xff] %v1869
        %1924 = vst [vmem:[%s324 + $0xc8] sm:$0xff] %v1872
        %1925 = vst [vmem:[%s324 + $0xd0] sm:$0xff] %v1877
        %1926 = vst [vmem:[%s324 + $0xd8] sm:$0xff] %v1880
        %1927 = vst [vmem:[%s324 + $0xe0] sm:$0xff] %v1885
        %1928 = vst [vmem:[%s324 + $0xe8] sm:$0xff] %v1888
        %1929 = vst [vmem:[%s324 + $0xf0] sm:$0xff] %v1893
        %1930 = vst [vmem:[%s324 + $0xf8] sm:$0xff] %v1896
        %s1931 = sand.u32 %s186, 1
        %s1932 = scalar_lea.sflag [#allocation3], %s1931
        %s1933 = sand.u32 %s186, 1
        %s1934 = smul.addr %s1933, 256
        %s1935 = scalar_lea.vmem [#allocation2], %s1934
        // Predicated region
        $region45: #{tpu_custom_call.1} parent=43 // pred_check
          %p1936 = pneg %p196
        $region46: #{tpu_custom_call.1} parent=43 // pred_check_branch
          %1938 = sbr.rel (%p1936) target = $region48
        $region47: #{tpu_custom_call.1} parent=43 // pred_region
          %s1939 = smul.u32 32, %s25
          %s1941 = ssub.s32 4096, 4096
          %1942 = vsyncadd %s1932, %s1941
          %s1943 = smul.addr %s1939, 2
          %s1944 = sadd.s32 %s24, %s1943
          %s1945 = smul.addr %s1944, 128
          %s1946 = scalar_lea.hbm %s6, %s1945
          %s1947 = sshll.u32 %s1935, 4
          %s1948 = int_to_ptr.vmem [resolvable:$true] %s1947
          %1953 = dma.vmem_to_hbm [thread:$0]  %s1948, 4096, %s1946, %s1932, 128, 256, 8
        $region48: #{tpu_custom_call.1} parent=43 // pred_fallthru
          _
      $region44: #{tpu_custom_call.1} parent=5 // pred_fallthru
        _
      %p1954 = scmp.le.s32.totalorder 2, %s15
      // Predicated region
      $region49: #{tpu_custom_call.1} parent=5 // pred_check
        %p1955 = pneg %p1954
      $region50: #{tpu_custom_call.1} parent=5 // pred_check_branch
        %1957 = sbr.rel (%p1955) target = $region52
      $region51: #{tpu_custom_call.1} parent=5 // pred_region
        %s1958 = ssub.s32 %s15, 2
        // Predicated region
        $region53: #{tpu_custom_call.1} parent=51 // pred_check
          %p1959 = pneg %p202
        $region54: #{tpu_custom_call.1} parent=51 // pred_check_branch
          %1961 = sbr.rel (%p1959) target = $region56
        $region55: #{tpu_custom_call.1} parent=51 // pred_region
          %s1962 = sand.u32 %s187, 1
          %s1963 = scalar_lea.sflag [#allocation3], %s1962
          %s1964 = sand.u32 %s187, 1
          %s1965 = smul.addr %s1964, 256
          %s1966 = scalar_lea.vmem [#allocation2], %s1965
          %1967 = dma.done %s1963, 4096
        $region56: #{tpu_custom_call.1} parent=51 // pred_fallthru
          _
      $region52: #{tpu_custom_call.1} parent=5 // pred_fallthru
        _
    $region6: #{tpu_custom_call.1} parent=1 // loop_footer
      %s19 = sadd.s32 1, %s15
    $region7: #{tpu_custom_call.1} parent=1 // loop_footer_branch
      %14 = sbr.rel target = $region3
    $region8: #{tpu_custom_call.1} parent=1 // loop_exit
      _
    %1968 = vsyncpa [#allocation3], 1
    %s1969 = scalar_lea.sflag [#allocation3], 1
    %1970 = vsyncpa %s1969, 1

</llo_original>
